<compile_context>
chip_gen: v6e
topology: v6e:2x2x1
jax: 0.10.0
libtpu: 0.0.40
codegen_flags: <defaults>
</compile_context>

<pallas_src>
import functools

import jax
import jax.numpy as jnp
from jax.experimental import pallas as pl
from jax.experimental.pallas import tpu as pltpu

DRQN_HIDDEN_SIZE = 256
TC_MAX = 16  # timesteps per chunk (keeps the (Tc, bb, 3H) f32 scratch < ~13 MiB)


def _round_up(x, m):
    return ((x + m - 1) // m) * m


# -----------------------------------------------------------------------------
# Kernel: one grid step = one (batch-block, time-chunk) pair.
# -----------------------------------------------------------------------------
def drqn_chunk_kernel(obs_ref, h0_ref,
                      w1_ref, b1_ref,
                      wih_ref, bi_ref,
                      whh_ref, bhn_ref,
                      w2_ref, b2_ref,
                      q_ref, hT_ref,
                      h_carry, gi_s, hs_s,
                      *, Tc, T_real, needs_mask):
    """
    obs_ref : (Tc, bb, obs_p) bf16   chunk of observations (obs_p = 128-padded)
    h0_ref  : (bb, H)         f32    initial hidden state for this batch block
    w*/b*   : bf16 weights / f32 biases, VMEM-resident across all chunks
    q_ref   : (Tc, bb, act_p) f32    lane-padded Q output for this chunk
    hT_ref  : (bb, H)         f32    final hidden state (written on last chunk)
    h_carry : (bb, H)         f32    VMEM scratch carrying h across chunks
    gi_s    : (Tc, bb, 3H)    f32    precomputed GRU input projection
    hs_s    : (Tc, bb, H)     bf16   per-step hidden states (fc2 input)
    """
    H = DRQN_HIDDEN_SIZE
    c = pl.program_id(1)
    nC = pl.num_programs(1)
    bb = h0_ref.shape[0]
    obs_p = obs_ref.shape[-1]

    @pl.when(c == 0)
    def _():
        h_carry[...] = h0_ref[...]

    # ---- batched (Tc*bb rows) fc1 + ReLU + GRU input projection ----
    obs2d = obs_ref[...].reshape(Tc * bb, obs_p)                       # bf16
    x = jnp.dot(obs2d, w1_ref[...],
                preferred_element_type=jnp.float32) + b1_ref[...]
    x = jnp.maximum(x, 0.0).astype(jnp.bfloat16)
    gi = jnp.dot(x, wih_ref[...],
                 preferred_element_type=jnp.float32) + bi_ref[...]     # (Tc*bb, 3H)
    gi_s[...] = gi.reshape(Tc, bb, 3 * H)

    # hoisted bias broadcast for the n-gate hidden part (loop-invariant)
    bhn_b = jnp.broadcast_to(bhn_ref[...], (bb, H))

    # ---- serial recurrence over the chunk (only h @ W_hh + gate math) ----
    def step(t, h):
        gh = jnp.dot(h.astype(jnp.bfloat16), whh_ref[...],
                     preferred_element_type=jnp.float32)               # (bb, 3H)
        gi_t = gi_s[t]                                                 # (bb, 3H)
        rz = jax.nn.sigmoid(gi_t[:, :2 * H] + gh[:, :2 * H])           # one EUP pass
        r = rz[:, :H]
        z = rz[:, H:]
        n = jnp.tanh(gi_t[:, 2 * H:] + r * (gh[:, 2 * H:] + bhn_b))
        h_new = (1.0 - z) * n + z * h                                  # f32 gate math
        if needs_mask:  # freeze h on padded timesteps so h_T stays exact
            h_new = jnp.where(c * Tc + t < T_real, h_new, h)
        hs_s[t] = h_new.astype(jnp.bfloat16)
        return h_new

    h_final = jax.lax.fori_loop(0, Tc, step, h_carry[...], unroll=True)
    h_carry[...] = h_final

    # ---- batched fc2 over the whole chunk ----
    hs2d = hs_s[...].reshape(Tc * bb, H)
    q = jnp.dot(hs2d, w2_ref[...],
                preferred_element_type=jnp.float32) + b2_ref[...]
    q_ref[...] = q.reshape(Tc, bb, q_ref.shape[-1])

    @pl.when(c == nC - 1)
    def _():
        hT_ref[...] = h_final


# -----------------------------------------------------------------------------
# Wrappers
# -----------------------------------------------------------------------------
def _pick_block_b(Bp0):
    """Batch block size: multiple of 16, >=2 blocks when B>=32 (v7x megacore),
    128 for large batches (256 on v6e when the batch is big enough)."""
    if Bp0 <= 16:
        return 16
    if Bp0 < 256:
        return _round_up((Bp0 + 1) // 2, 16)
    big = 128
    try:
        kind = jax.devices()[0].device_kind.lower()
        if Bp0 >= 512 and ("v6" in kind or "trillium" in kind):
            big = 256
    except Exception:
        pass
    return big


def drqn_forward_seq(obs_seq, h0, kparams):
    """Run the DRQN over a whole sequence.

    obs_seq: (T, B, obs_dim) f32, h0: (B, H) f32.
    Returns (q_seq (T, B, act_dim) f32, h_T (B, H) f32).
    """
    H = DRQN_HIDDEN_SIZE
    T, B, obs_dim = obs_seq.shape
    act_dim = kparams["act_dim"]
    act_p = kparams["w2"].shape[1]
    obs_p = kparams["w1"].shape[0]

    # Time chunking
    Tc = min(T, TC_MAX)
    T_pad = _round_up(T, Tc)
    nC = T_pad // Tc

    # Batch blocking
    Bp0 = _round_up(max(B, 16), 16)
    block_b = _pick_block_b(Bp0)
    Bp = _round_up(Bp0, block_b)
    nb = Bp // block_b

    obs = jnp.pad(obs_seq.astype(jnp.float32),
                  ((0, T_pad - T), (0, Bp - B), (0, obs_p - obs_dim)))
    obs = obs.astype(jnp.bfloat16)
    h0p = jnp.pad(h0.astype(jnp.float32), ((0, Bp - B), (0, 0)))

    kernel = functools.partial(drqn_chunk_kernel, Tc=Tc, T_real=T,
                               needs_mask=(T_pad != T))

    def _res(arr):  # VMEM-resident across the whole grid
        return pl.BlockSpec(arr.shape, lambda b, c: (0,) * arr.ndim)

    q_seq, h_T = pl.pallas_call(
        kernel,
        out_shape=(jax.ShapeDtypeStruct((T_pad, Bp, act_p), jnp.float32),
                   jax.ShapeDtypeStruct((Bp, H), jnp.float32)),
        grid=(nb, nC),
        in_specs=[
            pl.BlockSpec((Tc, block_b, obs_p), lambda b, c: (c, b, 0)),
            pl.BlockSpec((block_b, H), lambda b, c: (b, 0)),
            _res(kparams["w1"]), _res(kparams["b1"]),
            _res(kparams["w_ih"]), _res(kparams["b_i"]),
            _res(kparams["w_hh"]), _res(kparams["b_hn"]),
            _res(kparams["w2"]), _res(kparams["b2"]),
        ],
        out_specs=(
            pl.BlockSpec((Tc, block_b, act_p), lambda b, c: (c, b, 0)),
            pl.BlockSpec((block_b, H), lambda b, c: (b, 0)),
        ),
        scratch_shapes=[
            pltpu.VMEM((block_b, H), jnp.float32),            # h carry
            pltpu.VMEM((Tc, block_b, 3 * H), jnp.float32),    # Gi for the chunk
            pltpu.VMEM((Tc, block_b, H), jnp.bfloat16),       # per-step h (fc2 input)
        ],
        compiler_params=pltpu.CompilerParams(
            dimension_semantics=("parallel", "arbitrary")),
    )(obs, h0p,
      kparams["w1"], kparams["b1"],
      kparams["w_ih"], kparams["b_i"],
      kparams["w_hh"], kparams["b_hn"],
      kparams["w2"], kparams["b2"])

    return q_seq[:T, :B, :act_dim], h_T[:B]


def drqn_forward(obs, hidden_state, kparams):
    """Single-step forward matching the PyTorch DRQN.forward(obs, hidden_state)."""
    H = DRQN_HIDDEN_SIZE
    h_in = hidden_state.reshape(-1, H)
    q_seq, h = drqn_forward_seq(obs[None], h_in, kparams)
    return q_seq[0], h


# -----------------------------------------------------------------------------
# Parameter construction
# -----------------------------------------------------------------------------
def init_params(key, obs_dim, act_dim):
    """Synthetic parameters matching nn.Linear / nn.GRUCell, stored as (in, out)."""
    H = DRQN_HIDDEN_SIZE
    ks = jax.random.split(key, 8)
    scale = 0.05
    return {
        "w1":   scale * jax.random.normal(ks[0], (obs_dim, H), jnp.float32),
        "b1":   scale * jax.random.normal(ks[1], (1, H), jnp.float32),
        "w_ih": scale * jax.random.normal(ks[2], (H, 3 * H), jnp.float32),
        "b_ih": scale * jax.random.normal(ks[3], (1, 3 * H), jnp.float32),
        "w_hh": scale * jax.random.normal(ks[4], (H, 3 * H), jnp.float32),
        "b_hh": scale * jax.random.normal(ks[5], (1, 3 * H), jnp.float32),
        "w2":   scale * jax.random.normal(ks[6], (H, act_dim), jnp.float32),
        "b2":   scale * jax.random.normal(ks[7], (1, act_dim), jnp.float32),
    }


def prepare_params(params):
    """Kernel-side parameter set: bf16 weights stored (in, out); obs/fc2 dims
    128-lane padded; b_hh[r,z] folded into the Gi bias; separate n-gate bias."""
    H = DRQN_HIDDEN_SIZE
    obs_dim = params["w1"].shape[0]
    act_dim = params["w2"].shape[1]
    obs_p = _round_up(obs_dim, 128)
    act_p = _round_up(act_dim, 128)

    w1p = jnp.zeros((obs_p, H), jnp.float32).at[:obs_dim].set(params["w1"])
    b_i = jnp.concatenate([
        params["b_ih"][:, :2 * H] + params["b_hh"][:, :2 * H],   # r|z (folded)
        params["b_ih"][:, 2 * H:],                               # i_n bias
    ], axis=1)                                                   # (1, 3H)
    b_hn = params["b_hh"][:, 2 * H:]                             # (1, H)
    w2p = jnp.zeros((H, act_p), jnp.float32).at[:, :act_dim].set(params["w2"])
    b2p = jnp.zeros((1, act_p), jnp.float32).at[:, :act_dim].set(params["b2"])

    return {
        "w1": w1p.astype(jnp.bfloat16),
        "b1": params["b1"].astype(jnp.float32),
        "w_ih": params["w_ih"].astype(jnp.bfloat16),
        "b_i": b_i.astype(jnp.float32),
        "w_hh": params["w_hh"].astype(jnp.bfloat16),
        "b_hn": b_hn.astype(jnp.float32),
        "w2": w2p.astype(jnp.bfloat16),
        "b2": b2p.astype(jnp.float32),
        "act_dim": act_dim,
    }


def quantize_like_kernel(params):
    """f32 params whose weights are rounded through bf16 like the kernel's."""
    q = dict(params)
    for k in ("w1", "w_ih", "w_hh", "w2"):
        q[k] = params[k].astype(jnp.bfloat16).astype(jnp.float32)
    return q


# -----------------------------------------------------------------------------
# Pure-JAX reference (PyTorch GRUCell semantics)
# -----------------------------------------------------------------------------
def drqn_reference_step(obs, hidden_state, params):
    H = DRQN_HIDDEN_SIZE
    hp = jax.lax.Precision.HIGHEST
    x = jnp.maximum(jnp.dot(obs, params["w1"], precision=hp) + params["b1"], 0.0)
    h = hidden_state.reshape(-1, H)
    gi = jnp.dot(x, params["w_ih"], precision=hp) + params["b_ih"]
    gh = jnp.dot(h, params["w_hh"], precision=hp) + params["b_hh"]
    i_r, i_z, i_n = gi[:, :H], gi[:, H:2 * H], gi[:, 2 * H:]
    h_r, h_z, h_n = gh[:, :H], gh[:, H:2 * H], gh[:, 2 * H:]
    r = jax.nn.sigmoid(i_r + h_r)
    z = jax.nn.sigmoid(i_z + h_z)
    n = jnp.tanh(i_n + r * h_n)
    h_new = (1.0 - z) * n + z * h
    q = jnp.dot(h_new, params["w2"], precision=hp) + params["b2"]
    return q, h_new


# -----------------------------------------------------------------------------
# Self-test
# -----------------------------------------------------------------------------
if __name__ == "__main__":
    B, T = 64, 8
    OBS_DIM, ACT_DIM = 32, 6
    H = DRQN_HIDDEN_SIZE

    key = jax.random.PRNGKey(0)
    k_obs, k_h, k_p = jax.random.split(key, 3)
    obs_seq = jax.random.normal(k_obs, (T, B, OBS_DIM), jnp.float32)
    h0 = jax.random.normal(k_h, (B, H), jnp.float32)

    params = init_params(k_p, OBS_DIM, ACT_DIM)
    kparams = prepare_params(params)
    qparams = quantize_like_kernel(params)   # reference sees bf16-rounded weights

    # ---- single step (matches the PyTorch DRQN.forward signature) ----
    q1, h1 = drqn_forward(obs_seq[0], h0, kparams)
    jax.block_until_ready((q1, h1))
    q1_ref, h1_ref = drqn_reference_step(obs_seq[0], h0, qparams)
    assert q1.shape == (B, ACT_DIM) and h1.shape == (B, H)
    assert jnp.allclose(q1, q1_ref, atol=2e-2, rtol=2e-2), \
        f"q mismatch: {jnp.max(jnp.abs(q1 - q1_ref))}"
    assert jnp.allclose(h1, h1_ref, atol=2e-2, rtol=2e-2), \
        f"h mismatch: {jnp.max(jnp.abs(h1 - h1_ref))}"

    # ---- full sequence (single chunk, T == Tc) ----
    q_seq, h_T = drqn_forward_seq(obs_seq, h0, kparams)
    jax.block_until_ready((q_seq, h_T))

    h_ref = h0
    q_ref_steps = []
    for t in range(T):
        qt, h_ref = drqn_reference_step(obs_seq[t], h_ref, qparams)
        q_ref_steps.append(qt)
    q_seq_ref = jnp.stack(q_ref_steps, axis=0)

    assert q_seq.shape == (T, B, ACT_DIM) and h_T.shape == (B, H)
    assert jnp.allclose(q_seq, q_seq_ref, atol=5e-2, rtol=5e-2), \
        f"q_seq mismatch: {jnp.max(jnp.abs(q_seq - q_seq_ref))}"
    assert jnp.allclose(h_T, h_ref, atol=5e-2, rtol=5e-2), \
        f"h_T mismatch: {jnp.max(jnp.abs(h_T - h_ref))}"

    # ---- longer sequence: exercises multi-chunk carry + padded-step masking ----
    T2 = 20
    obs_seq2 = jax.random.normal(jax.random.PRNGKey(7), (T2, B, OBS_DIM), jnp.float32)
    q_seq2, h_T2 = drqn_forward_seq(obs_seq2, h0, kparams)
    jax.block_until_ready((q_seq2, h_T2))

    h_ref2 = h0
    q_ref2_steps = []
    for t in range(T2):
        qt, h_ref2 = drqn_reference_step(obs_seq2[t], h_ref2, qparams)
        q_ref2_steps.append(qt)
    q_seq2_ref = jnp.stack(q_ref2_steps, axis=0)

    assert q_seq2.shape == (T2, B, ACT_DIM) and h_T2.shape == (B, H)
    assert jnp.allclose(q_seq2, q_seq2_ref, atol=1e-1, rtol=1e-1), \
        f"q_seq2 mismatch: {jnp.max(jnp.abs(q_seq2 - q_seq2_ref))}"
    assert jnp.allclose(h_T2, h_ref2, atol=1e-1, rtol=1e-1), \
        f"h_T2 mismatch: {jnp.max(jnp.abs(h_T2 - h_ref2))}"

    print("KERNEL_OK")
</pallas_src>

<mosaic_0001>
module attributes {stable_mosaic.version = 11 : i64} {
  func.func @drqn_chunk_kernel(%arg0: i32, %arg1: i32, %arg2: memref<1x32x128xbf16, #tpu.memory_space<vmem>>, %arg3: memref<32x256xf32, #tpu.memory_space<vmem>>, %arg4: memref<128x256xbf16, #tpu.memory_space<vmem>>, %arg5: memref<1x256xf32, #tpu.memory_space<vmem>>, %arg6: memref<256x768xbf16, #tpu.memory_space<vmem>>, %arg7: memref<1x768xf32, #tpu.memory_space<vmem>>, %arg8: memref<256x768xbf16, #tpu.memory_space<vmem>>, %arg9: memref<1x256xf32, #tpu.memory_space<vmem>>, %arg10: memref<256x128xbf16, #tpu.memory_space<vmem>>, %arg11: memref<1x128xf32, #tpu.memory_space<vmem>>, %arg12: memref<1x32x128xf32, #tpu.memory_space<vmem>>, %arg13: memref<32x256xf32, #tpu.memory_space<vmem>>, %arg14: memref<32x256xf32, #tpu.memory_space<vmem>>, %arg15: memref<1x32x768xf32, #tpu.memory_space<vmem>>, %arg16: memref<1x32x256xbf16, #tpu.memory_space<vmem>>) attributes {dimension_semantics = [#tpu.dimension_semantics<parallel>, #tpu.dimension_semantics<arbitrary>], iteration_bounds = array<i64: 2, 1>, scalar_prefetch = 0 : i64, scratch_operands = 3 : i64, tpu.core_type = #tpu.core_type<tc>, window_params = [{transform_indices = @transform_0, window_bounds = array<i64: 1, 32, 128>}, {transform_indices = @transform_1, window_bounds = array<i64: 32, 256>}, {pipeline_mode = #tpu.pipeline_mode<synchronous>, transform_indices = @transform_2, window_bounds = array<i64: 128, 256>}, {pipeline_mode = #tpu.pipeline_mode<synchronous>, transform_indices = @transform_3, window_bounds = array<i64: 1, 256>}, {pipeline_mode = #tpu.pipeline_mode<synchronous>, transform_indices = @transform_4, window_bounds = array<i64: 256, 768>}, {pipeline_mode = #tpu.pipeline_mode<synchronous>, transform_indices = @transform_5, window_bounds = array<i64: 1, 768>}, {pipeline_mode = #tpu.pipeline_mode<synchronous>, transform_indices = @transform_6, window_bounds = array<i64: 256, 768>}, {pipeline_mode = #tpu.pipeline_mode<synchronous>, transform_indices = @transform_7, window_bounds = array<i64: 1, 256>}, {pipeline_mode = #tpu.pipeline_mode<synchronous>, transform_indices = @transform_8, window_bounds = array<i64: 256, 128>}, {pipeline_mode = #tpu.pipeline_mode<synchronous>, transform_indices = @transform_9, window_bounds = array<i64: 1, 128>}, {transform_indices = @transform_10, window_bounds = array<i64: 1, 32, 128>}, {transform_indices = @transform_11, window_bounds = array<i64: 32, 256>}]} {
    %c0_i32 = arith.constant 0 : i32
    %0 = arith.cmpi eq, %arg1, %c0_i32 : i32
    %1 = arith.extui %0 : i1 to i32
    %c0_i32_0 = arith.constant 0 : i32
    %2 = arith.cmpi ne, %1, %c0_i32_0 : i32
    scf.if %2 {
      %c0_45 = arith.constant 0 : index
      %c0_46 = arith.constant 0 : index
      %69 = vector.load %arg3[%c0_45, %c0_46] : memref<32x256xf32, #tpu.memory_space<vmem>>, vector<32x256xf32>
      %c0_47 = arith.constant 0 : index
      %c0_48 = arith.constant 0 : index
      %70 = vector.load %arg14[%c0_47, %c0_48] : memref<32x256xf32, #tpu.memory_space<vmem>>, vector<32x256xf32>
      tpu.vector_store %arg14[%c0_47, %c0_48], %69 {strides = array<i32>} : memref<32x256xf32, #tpu.memory_space<vmem>>, vector<32x256xf32>,
    } else {
    }
    %c0 = arith.constant 0 : index
    %c0_1 = arith.constant 0 : index
    %c0_2 = arith.constant 0 : index
    %3 = vector.load %arg2[%c0, %c0_1, %c0_2] : memref<1x32x128xbf16, #tpu.memory_space<vmem>>, vector<1x32x128xbf16>
    %4 = vector.shape_cast %3 : vector<1x32x128xbf16> to vector<32x128xbf16>
    %c0_3 = arith.constant 0 : index
    %c0_4 = arith.constant 0 : index
    %5 = vector.load %arg4[%c0_3, %c0_4] : memref<128x256xbf16, #tpu.memory_space<vmem>>, vector<128x256xbf16>
    %cst = arith.constant dense<0.000000e+00> : vector<32x256xf32>
    %6 = tpu.matmul %4, %5, %cst {dimension_numbers = #tpu.dot_dimension_numbers<[1], [0], [0], [1], [0, 0, 1, 1], [], []>} : vector<32x128xbf16>, vector<128x256xbf16>, vector<32x256xf32> -> vector<32x256xf32>
    %c0_5 = arith.constant 0 : index
    %c0_6 = arith.constant 0 : index
    %7 = vector.load %arg5[%c0_5, %c0_6] : memref<1x256xf32, #tpu.memory_space<vmem>>, vector<1x256xf32>
    %8 = vector.broadcast %7 : vector<1x256xf32> to vector<32x256xf32>
    %9 = arith.addf %6, %8 : vector<32x256xf32>
    %cst_7 = arith.constant 0.000000e+00 : f32
    %10 = vector.broadcast %cst_7 : f32 to vector<32x256xf32>
    %11 = arith.maximumf %9, %10 : vector<32x256xf32>
    %12 = arith.truncf %11 : vector<32x256xf32> to vector<32x256xbf16>
    %c0_8 = arith.constant 0 : index
    %c0_9 = arith.constant 0 : index
    %13 = vector.load %arg6[%c0_8, %c0_9] : memref<256x768xbf16, #tpu.memory_space<vmem>>, vector<256x768xbf16>
    %cst_10 = arith.constant dense<0.000000e+00> : vector<32x768xf32>
    %14 = tpu.matmul %12, %13, %cst_10 {dimension_numbers = #tpu.dot_dimension_numbers<[1], [0], [0], [1], [0, 0, 1, 1], [], []>} : vector<32x256xbf16>, vector<256x768xbf16>, vector<32x768xf32> -> vector<32x768xf32>
    %c0_11 = arith.constant 0 : index
    %c0_12 = arith.constant 0 : index
    %15 = vector.load %arg7[%c0_11, %c0_12] : memref<1x768xf32, #tpu.memory_space<vmem>>, vector<1x768xf32>
    %16 = vector.broadcast %15 : vector<1x768xf32> to vector<32x768xf32>
    %17 = arith.addf %14, %16 : vector<32x768xf32>
    %18 = vector.shape_cast %17 : vector<32x768xf32> to vector<1x32x768xf32>
    %c0_13 = arith.constant 0 : index
    %c0_14 = arith.constant 0 : index
    %c0_15 = arith.constant 0 : index
    %19 = vector.load %arg15[%c0_13, %c0_14, %c0_15] : memref<1x32x768xf32, #tpu.memory_space<vmem>>, vector<1x32x768xf32>
    tpu.vector_store %arg15[%c0_13, %c0_14, %c0_15], %18 {strides = array<i32>} : memref<1x32x768xf32, #tpu.memory_space<vmem>>, vector<1x32x768xf32>,
    %c0_16 = arith.constant 0 : index
    %c0_17 = arith.constant 0 : index
    %20 = vector.load %arg9[%c0_16, %c0_17] : memref<1x256xf32, #tpu.memory_space<vmem>>, vector<1x256xf32>
    %21 = vector.shape_cast %20 : vector<1x256xf32> to vector<1x256xf32>
    %22 = vector.broadcast %21 : vector<1x256xf32> to vector<32x256xf32>
    %c0_18 = arith.constant 0 : index
    %c0_19 = arith.constant 0 : index
    %23 = vector.load %arg14[%c0_18, %c0_19] : memref<32x256xf32, #tpu.memory_space<vmem>>, vector<32x256xf32>
    %c0_i32_20 = arith.constant 0 : i32
    %24 = arith.truncf %23 : vector<32x256xf32> to vector<32x256xbf16>
    %c0_21 = arith.constant 0 : index
    %c0_22 = arith.constant 0 : index
    %25 = vector.load %arg8[%c0_21, %c0_22] : memref<256x768xbf16, #tpu.memory_space<vmem>>, vector<256x768xbf16>
    %cst_23 = arith.constant dense<0.000000e+00> : vector<32x768xf32>
    %26 = tpu.matmul %24, %25, %cst_23 {dimension_numbers = #tpu.dot_dimension_numbers<[1], [0], [0], [1], [0, 0, 1, 1], [], []>} : vector<32x256xbf16>, vector<256x768xbf16>, vector<32x768xf32> -> vector<32x768xf32>
    %27 = arith.index_cast %c0_i32_20 : i32 to index
    %c0_24 = arith.constant 0 : index
    %c0_25 = arith.constant 0 : index
    %28 = vector.load %arg15[%27, %c0_24, %c0_25] : memref<1x32x768xf32, #tpu.memory_space<vmem>>, vector<1x32x768xf32>
    %29 = vector.shape_cast %28 : vector<1x32x768xf32> to vector<32x768xf32>
    %30 = vector.extract_strided_slice %29 {offsets = [0, 0], sizes = [32, 512], strides = [1, 1]} : vector<32x768xf32> to vector<32x512xf32>
    %31 = vector.extract_strided_slice %26 {offsets = [0, 0], sizes = [32, 512], strides = [1, 1]} : vector<32x768xf32> to vector<32x512xf32>
    %32 = arith.addf %30, %31 : vector<32x512xf32>
    %33 = arith.negf %32 : vector<32x512xf32>
    %34 = math.exp %33 : vector<32x512xf32>
    %cst_26 = arith.constant 1.000000e+00 : f32
    %35 = vector.broadcast %cst_26 : f32 to vector<32x512xf32>
    %36 = arith.addf %35, %34 : vector<32x512xf32>
    %37 = arith.divf %35, %36 : vector<32x512xf32>
    %38 = vector.extract_strided_slice %37 {offsets = [0, 0], sizes = [32, 256], strides = [1, 1]} : vector<32x512xf32> to vector<32x256xf32>
    %39 = vector.extract_strided_slice %37 {offsets = [0, 256], sizes = [32, 256], strides = [1, 1]} : vector<32x512xf32> to vector<32x256xf32>
    %40 = vector.extract_strided_slice %29 {offsets = [0, 512], sizes = [32, 256], strides = [1, 1]} : vector<32x768xf32> to vector<32x256xf32>
    %41 = vector.extract_strided_slice %26 {offsets = [0, 512], sizes = [32, 256], strides = [1, 1]} : vector<32x768xf32> to vector<32x256xf32>
    %42 = arith.addf %41, %22 : vector<32x256xf32>
    %43 = arith.mulf %38, %42 : vector<32x256xf32>
    %44 = arith.addf %40, %43 : vector<32x256xf32>
    %45 = math.tanh %44 : vector<32x256xf32>
    %cst_27 = arith.constant 1.000000e+00 : f32
    %46 = vector.broadcast %cst_27 : f32 to vector<32x256xf32>
    %47 = arith.subf %46, %39 : vector<32x256xf32>
    %48 = arith.mulf %47, %45 : vector<32x256xf32>
    %49 = arith.mulf %39, %23 : vector<32x256xf32>
    %50 = arith.addf %48, %49 : vector<32x256xf32>
    %51 = arith.truncf %50 : vector<32x256xf32> to vector<32x256xbf16>
    %52 = arith.index_cast %c0_i32_20 : i32 to index
    %c0_28 = arith.constant 0 : index
    %c0_29 = arith.constant 0 : index
    %53 = vector.load %arg16[%52, %c0_28, %c0_29] : memref<1x32x256xbf16, #tpu.memory_space<vmem>>, vector<1x32x256xbf16>
    %54 = vector.shape_cast %53 : vector<1x32x256xbf16> to vector<32x256xbf16>
    %55 = vector.shape_cast %51 : vector<32x256xbf16> to vector<1x32x256xbf16>
    tpu.vector_store %arg16[%52, %c0_28, %c0_29], %55 {strides = array<i32>} : memref<1x32x256xbf16, #tpu.memory_space<vmem>>, vector<1x32x256xbf16>,
    %c1_i32 = arith.constant 1 : i32
    %c0_30 = arith.constant 0 : index
    %c0_31 = arith.constant 0 : index
    %56 = vector.load %arg14[%c0_30, %c0_31] : memref<32x256xf32, #tpu.memory_space<vmem>>, vector<32x256xf32>
    tpu.vector_store %arg14[%c0_30, %c0_31], %50 {strides = array<i32>} : memref<32x256xf32, #tpu.memory_space<vmem>>, vector<32x256xf32>,
    %c0_32 = arith.constant 0 : index
    %c0_33 = arith.constant 0 : index
    %c0_34 = arith.constant 0 : index
    %57 = vector.load %arg16[%c0_32, %c0_33, %c0_34] : memref<1x32x256xbf16, #tpu.memory_space<vmem>>, vector<1x32x256xbf16>
    %58 = vector.shape_cast %57 : vector<1x32x256xbf16> to vector<32x256xbf16>
    %c0_35 = arith.constant 0 : index
    %c0_36 = arith.constant 0 : index
    %59 = vector.load %arg10[%c0_35, %c0_36] : memref<256x128xbf16, #tpu.memory_space<vmem>>, vector<256x128xbf16>
    %cst_37 = arith.constant dense<0.000000e+00> : vector<32x128xf32>
    %60 = tpu.matmul %58, %59, %cst_37 {dimension_numbers = #tpu.dot_dimension_numbers<[1], [0], [0], [1], [0, 0, 1, 1], [], []>} : vector<32x256xbf16>, vector<256x128xbf16>, vector<32x128xf32> -> vector<32x128xf32>
    %c0_38 = arith.constant 0 : index
    %c0_39 = arith.constant 0 : index
    %61 = vector.load %arg11[%c0_38, %c0_39] : memref<1x128xf32, #tpu.memory_space<vmem>>, vector<1x128xf32>
    %62 = vector.broadcast %61 : vector<1x128xf32> to vector<32x128xf32>
    %63 = arith.addf %60, %62 : vector<32x128xf32>
    %64 = vector.shape_cast %63 : vector<32x128xf32> to vector<1x32x128xf32>
    %c0_40 = arith.constant 0 : index
    %c0_41 = arith.constant 0 : index
    %c0_42 = arith.constant 0 : index
    %65 = vector.load %arg12[%c0_40, %c0_41, %c0_42] : memref<1x32x128xf32, #tpu.memory_space<vmem>>, vector<1x32x128xf32>
    tpu.vector_store %arg12[%c0_40, %c0_41, %c0_42], %64 {strides = array<i32>} : memref<1x32x128xf32, #tpu.memory_space<vmem>>, vector<1x32x128xf32>,
    %c0_i32_43 = arith.constant 0 : i32
    %66 = arith.cmpi eq, %arg1, %c0_i32_43 : i32
    %67 = arith.extui %66 : i1 to i32
    %c0_i32_44 = arith.constant 0 : i32
    %68 = arith.cmpi ne, %67, %c0_i32_44 : i32
    scf.if %68 {
      %c0_45 = arith.constant 0 : index
      %c0_46 = arith.constant 0 : index
      %69 = vector.load %arg13[%c0_45, %c0_46] : memref<32x256xf32, #tpu.memory_space<vmem>>, vector<32x256xf32>
      tpu.vector_store %arg13[%c0_45, %c0_46], %50 {strides = array<i32>} : memref<32x256xf32, #tpu.memory_space<vmem>>, vector<32x256xf32>,
    } else {
    }
    return
  }
  func.func @transform_0(%arg0: i32, %arg1: i32) -> (i32, i32, i32) {
    %c0_i32 = arith.constant 0 : i32
    %c0_i32_0 = arith.constant 0 : i32
    return %arg1, %arg0, %c0_i32 : i32, i32, i32
  }
  func.func @transform_1(%arg0: i32, %arg1: i32) -> (i32, i32) {
    %c0_i32 = arith.constant 0 : i32
    %c0_i32_0 = arith.constant 0 : i32
    return %arg0, %c0_i32 : i32, i32
  }
  func.func @transform_2(%arg0: i32, %arg1: i32) -> (i32, i32) {
    %c0_i32 = arith.constant 0 : i32
    %c0_i32_0 = arith.constant 0 : i32
    %c0_i32_1 = arith.constant 0 : i32
    return %c0_i32, %c0_i32_0 : i32, i32
  }
  func.func @transform_3(%arg0: i32, %arg1: i32) -> (i32, i32) {
    %c0_i32 = arith.constant 0 : i32
    %c0_i32_0 = arith.constant 0 : i32
    %c0_i32_1 = arith.constant 0 : i32
    return %c0_i32, %c0_i32_0 : i32, i32
  }
  func.func @transform_4(%arg0: i32, %arg1: i32) -> (i32, i32) {
    %c0_i32 = arith.constant 0 : i32
    %c0_i32_0 = arith.constant 0 : i32
    %c0_i32_1 = arith.constant 0 : i32
    return %c0_i32, %c0_i32_0 : i32, i32
  }
  func.func @transform_5(%arg0: i32, %arg1: i32) -> (i32, i32) {
    %c0_i32 = arith.constant 0 : i32
    %c0_i32_0 = arith.constant 0 : i32
    %c0_i32_1 = arith.constant 0 : i32
    return %c0_i32, %c0_i32_0 : i32, i32
  }
  func.func @transform_6(%arg0: i32, %arg1: i32) -> (i32, i32) {
    %c0_i32 = arith.constant 0 : i32
    %c0_i32_0 = arith.constant 0 : i32
    %c0_i32_1 = arith.constant 0 : i32
    return %c0_i32, %c0_i32_0 : i32, i32
  }
  func.func @transform_7(%arg0: i32, %arg1: i32) -> (i32, i32) {
    %c0_i32 = arith.constant 0 : i32
    %c0_i32_0 = arith.constant 0 : i32
    %c0_i32_1 = arith.constant 0 : i32
    return %c0_i32, %c0_i32_0 : i32, i32
  }
  func.func @transform_8(%arg0: i32, %arg1: i32) -> (i32, i32) {
    %c0_i32 = arith.constant 0 : i32
    %c0_i32_0 = arith.constant 0 : i32
    %c0_i32_1 = arith.constant 0 : i32
    return %c0_i32, %c0_i32_0 : i32, i32
  }
  func.func @transform_9(%arg0: i32, %arg1: i32) -> (i32, i32) {
    %c0_i32 = arith.constant 0 : i32
    %c0_i32_0 = arith.constant 0 : i32
    %c0_i32_1 = arith.constant 0 : i32
    return %c0_i32, %c0_i32_0 : i32, i32
  }
  func.func @transform_10(%arg0: i32, %arg1: i32) -> (i32, i32, i32) {
    %c0_i32 = arith.constant 0 : i32
    %c0_i32_0 = arith.constant 0 : i32
    return %arg1, %arg0, %c0_i32 : i32, i32, i32
  }
  func.func @transform_11(%arg0: i32, %arg1: i32) -> (i32, i32) {
    %c0_i32 = arith.constant 0 : i32
    %c0_i32_0 = arith.constant 0 : i32
    return %arg0, %c0_i32 : i32, i32
  }
}

</mosaic_0001>

<llo_original>
// kernel: tpu_custom_call.1
$region0: #{tpu_custom_call.1}
  #allocation0 [shape = 'u32[]', space=smem, size = 0x4, offset = 0x4, fixed_abs, tag = 'smem constant byte address 0x4 - core index']
  #allocation1 [shape = 'u32[144,128]{1,0:T(1,128)}', space=vmem, size = 0x12000, scoped, tag = 'internal scratch']
  #allocation2 [shape = 'f32[32,256]{1,0:T(8,128)}', space=vmem, size = 0x8000, scoped, tag = 'scratch operand']
  #allocation3 [shape = 'f32[1,32,768]{2,1,0:T(8,128)}', space=vmem, size = 0x18000, scoped, tag = 'scratch operand']
  #allocation4 [shape = 'bf16[1,32,256]{2,1,0:T(8,128)(2,1)}', space=vmem, size = 0x4000, scoped, tag = 'scratch operand']
  %s0 = inlined_call_operand.hbm [shape: bf16[1,64,128], index: 0, kind: input, shape index: {}]
  %s1 = inlined_call_operand.hbm [shape: f32[64,256], index: 1, kind: input, shape index: {}]
  %s2 = inlined_call_operand.hbm [shape: bf16[128,256], index: 2, kind: input, shape index: {}]
  %s3 = inlined_call_operand.vmem [shape: f32[1,256], index: 3, kind: input, shape index: {}]
  %s4 = inlined_call_operand.hbm [shape: bf16[256,768], index: 4, kind: input, shape index: {}]
  %s5 = inlined_call_operand.vmem [shape: f32[1,768], index: 5, kind: input, shape index: {}]
  %s6 = inlined_call_operand.hbm [shape: bf16[256,768], index: 6, kind: input, shape index: {}]
  %s7 = inlined_call_operand.vmem [shape: f32[1,256], index: 7, kind: input, shape index: {}]
  %s8 = inlined_call_operand.hbm [shape: bf16[256,128], index: 8, kind: input, shape index: {}]
  %s9 = inlined_call_operand.vmem [shape: f32[1,128], index: 9, kind: input, shape index: {}]
  %s10 = inlined_call_operand.hbm [shape: f32[1,64,128], index: 10, kind: output, shape index: {0}]
  %s11 = inlined_call_operand.hbm [shape: f32[64,256], index: 11, kind: output, shape index: {1}]
  %12 = xla_tuple %s10, %s11
  %s13 = sld [smem:[#allocation0]]
  $region113: #{tpu_custom_call.1} parent=0
    _
  %s15 = ssub.s32 1, %s13
  %s16 = scalar_select 0, %s15, %s13
  $region1: #{tpu_custom_call.1} parent=0
    #allocation5 [shape = 'u8[16384]{0}', space=vmem, size = 0x4000, scoped, tag = 'input window, operand 0']
    #allocation6 [shape = 's32[2]{0}', space=sflag, size = 0x8, scoped, tag = 'scoped memory for tpu_custom_call.1']
    #allocation7 [shape = 's32[2]{0}', space=sflag, size = 0x8, scoped, tag = 'scoped memory for tpu_custom_call.1']
    #allocation8 [shape = 'u8[65536]{0}', space=vmem, size = 0x10000, scoped, tag = 'input window, operand 1']
    #allocation9 [shape = 's32[2]{0}', space=sflag, size = 0x8, scoped, tag = 'scoped memory for tpu_custom_call.1']
    #allocation10 [shape = 'u8[65536]{0}', space=vmem, size = 0x10000, scoped, tag = 'input window, operand 2, single buffered']
    #allocation11 [shape = 'u8[393216]{0}', space=vmem, size = 0x60000, scoped, tag = 'input window, operand 4, single buffered']
    #allocation12 [shape = 's32[1]{0}', space=sflag, size = 0x4, scoped, tag = 'scoped memory for tpu_custom_call.1']
    #allocation13 [shape = 'u8[393216]{0}', space=vmem, size = 0x60000, scoped, tag = 'input window, operand 6, single buffered']
    #allocation14 [shape = 'u8[65536]{0}', space=vmem, size = 0x10000, scoped, tag = 'input window, operand 8, single buffered']
    #allocation15 [shape = 's32[1]{0}', space=sflag, size = 0x4, scoped, tag = 'scoped memory for tpu_custom_call.1']
    #allocation16 [shape = 'u8[32768]{0}', space=vmem, size = 0x8000, scoped, tag = 'output window, operand 0']
    #allocation17 [shape = 'u8[65536]{0}', space=vmem, size = 0x10000, scoped, tag = 'output window, operand 1']
    #allocation18 [shape = 's32[2]{0}', space=sflag, size = 0x8, scoped, tag = 'scoped memory for tpu_custom_call.1']
    %17 = vsyncpa [#allocation6], 0
    %s18 = scalar_lea.sflag [#allocation6], 1
    %19 = vsyncpa %s18, 0
    %20 = vsyncpa [#allocation9], 0
    %s21 = scalar_lea.sflag [#allocation9], 1
    %22 = vsyncpa %s21, 0
    %23 = vsyncpa [#allocation12], 0
    %24 = vsyncpa [#allocation15], 0
    %25 = vsyncpa [#allocation7], 0
    %s26 = scalar_lea.sflag [#allocation7], 1
    %27 = vsyncpa %s26, 0
    %28 = vsyncpa [#allocation18], 0
    %s29 = scalar_lea.sflag [#allocation18], 1
    %30 = vsyncpa %s29, 0
    loop: start=0, step=1, limit=4
    $region2: #{tpu_custom_call.1} parent=1 // loop_pre_header
      _
    $region3: #{tpu_custom_call.1} parent=1 // loop_header
      %s32 = sphi 0, %s36
      %p33 = scmp.ge.s32.totalorder %s32, 4
      %s39 = sphi 0, %s51
      %s40 = sphi 0, %s47
      %s41 = sphi 0, %s39
      %s42 = sphi 0, %s40
      %s43 = sphi 0, %s41
      %s44 = sphi 0, %s42
      %s56 = sphi 0, %s58
      %s59 = sphi 0, %s56
      %s60 = sphi 0, %s59
      %s76 = sphi 0, %s60
      %s82 = sphi 0, %s84
      %s85 = sphi 0, %s82
      %s86 = sphi 0, %s85
      %s102 = sphi 0, %s86
      %s106 = sphi 0, %s106
      %s108 = sphi 0, %s106
      %s109 = sphi 0, %s108
      %s123 = sphi 0, %s109
      %s127 = sphi 0, %s127
      %s129 = sphi 0, %s127
      %s130 = sphi 0, %s129
      %s144 = sphi 0, %s130
      %s148 = sphi 0, %s148
      %s150 = sphi 0, %s148
      %s151 = sphi 0, %s150
      %s165 = sphi 0, %s151
      %s169 = sphi 0, %s169
      %s171 = sphi 0, %s169
      %s172 = sphi 0, %s171
      %s186 = sphi 0, %s172
      %s190 = sphi 0, %s190
      %s192 = sphi 0, %s190
      %s193 = sphi 0, %s192
      %s207 = sphi 0, %s193
      %s211 = sphi 0, %s211
      %s213 = sphi 0, %s211
      %s214 = sphi 0, %s213
      %s228 = sphi 0, %s214
      %s232 = sphi 0, %s232
      %s234 = sphi 0, %s232
      %s235 = sphi 0, %s234
      %s249 = sphi 0, %s235
      %s253 = sphi 0, %s253
      %s255 = sphi 0, %s253
      %s256 = sphi 0, %s255
      %s270 = sphi 0, %s256
      %s278 = sphi 0, %s280
      %s281 = sphi 0, %s278
      %s282 = sphi 0, %s281
      %s298 = sphi 0, %s282
      %s304 = sphi 0, %s306
      %s307 = sphi 0, %s304
      %s308 = sphi 0, %s307
      %s324 = sphi 0, %s308
    $region4: #{tpu_custom_call.1} parent=1 // loop_header_branch
      %35 = sbr.rel (%p33) target = $region8
    $region5: #{tpu_custom_call.1} parent=1 // loop_body
      %s37 = ssub.s32 %s32, 1
      %s38 = ssub.s32 %s32, 2
      %s45 = sadd.s32 1, %s40
      %p46 = scmp.ge.s32.totalorder %s45, 1
      %s47 = scalar_select %p46, 0, %s45
      %s48 = sadd.s32 1, %s39
      %s49 = scalar_select %p46, %s48, %s39
      %p50 = scmp.ge.s32.totalorder %s49, 2
      %s51 = scalar_select %p50, 0, %s49
      %s52 = ssub.s32 %s40, %s47
      %s53 = ssub.s32 %s39, %s51
      %s54 = sor.u32 %s52, %s53
      %p55 = scmp.eq.s32.totalorder %s54, 0
      %s57 = sadd.s32 %s56, 1
      %s58 = scalar_select %p55, %s56, %s57
      %p61 = pneg %p55
      %p62 = scmp.eq.s32.totalorder %s32, 1
      %p63 = por %p61, %p62
      %p64 = scmp.ne.s32.totalorder %s56, %s59
      %p65 = scmp.eq.s32.totalorder %s32, 0
      %p66 = por %p64, %p65
      %p67 = scmp.ne.s32.totalorder %s56, %s59
      %p68 = scmp.eq.s32.totalorder %s37, 1
      %p69 = por %p67, %p68
      %p70 = scmp.ne.s32.totalorder %s59, %s60
      %p71 = scmp.eq.s32.totalorder %s37, 0
      %p72 = por %p70, %p71
      %p73 = scmp.ne.s32.totalorder %s59, %s60
      %p74 = scmp.eq.s32.totalorder %s38, 1
      %p75 = por %p73, %p74
      %p77 = scmp.ne.s32.totalorder %s60, %s76
      %p78 = scmp.eq.s32.totalorder %s38, 0
      %p79 = por %p77, %p78
      %s80 = ssub.s32 %s39, %s51
      %p81 = scmp.eq.s32.totalorder %s80, 0
      %s83 = sadd.s32 %s82, 1
      %s84 = scalar_select %p81, %s82, %s83
      %p87 = pneg %p81
      %p88 = scmp.eq.s32.totalorder %s32, 1
      %p89 = por %p87, %p88
      %p90 = scmp.ne.s32.totalorder %s82, %s85
      %p91 = scmp.eq.s32.totalorder %s32, 0
      %p92 = por %p90, %p91
      %p93 = scmp.ne.s32.totalorder %s82, %s85
      %p94 = scmp.eq.s32.totalorder %s37, 1
      %p95 = por %p93, %p94
      %p96 = scmp.ne.s32.totalorder %s85, %s86
      %p97 = scmp.eq.s32.totalorder %s37, 0
      %p98 = por %p96, %p97
      %p99 = scmp.ne.s32.totalorder %s85, %s86
      %p100 = scmp.eq.s32.totalorder %s38, 1
      %p101 = por %p99, %p100
      %p103 = scmp.ne.s32.totalorder %s86, %s102
      %p104 = scmp.eq.s32.totalorder %s38, 0
      %p105 = por %p103, %p104
      %s107 = sadd.s32 %s106, 1
      %p110 = scmp.eq.s32.totalorder %s32, 1
      %p111 = scmp.ne.s32.totalorder %s106, %s108
      %p112 = scmp.eq.s32.totalorder %s32, 0
      %p113 = por %p111, %p112
      %p114 = scmp.ne.s32.totalorder %s106, %s108
      %p115 = scmp.eq.s32.totalorder %s37, 1
      %p116 = por %p114, %p115
      %p117 = scmp.ne.s32.totalorder %s108, %s109
      %p118 = scmp.eq.s32.totalorder %s37, 0
      %p119 = por %p117, %p118
      %p120 = scmp.ne.s32.totalorder %s108, %s109
      %p121 = scmp.eq.s32.totalorder %s38, 1
      %p122 = por %p120, %p121
      %p124 = scmp.ne.s32.totalorder %s109, %s123
      %p125 = scmp.eq.s32.totalorder %s38, 0
      %p126 = por %p124, %p125
      %s128 = sadd.s32 %s127, 1
      %p131 = scmp.eq.s32.totalorder %s32, 1
      %p132 = scmp.ne.s32.totalorder %s127, %s129
      %p133 = scmp.eq.s32.totalorder %s32, 0
      %p134 = por %p132, %p133
      %p135 = scmp.ne.s32.totalorder %s127, %s129
      %p136 = scmp.eq.s32.totalorder %s37, 1
      %p137 = por %p135, %p136
      %p138 = scmp.ne.s32.totalorder %s129, %s130
      %p139 = scmp.eq.s32.totalorder %s37, 0
      %p140 = por %p138, %p139
      %p141 = scmp.ne.s32.totalorder %s129, %s130
      %p142 = scmp.eq.s32.totalorder %s38, 1
      %p143 = por %p141, %p142
      %p145 = scmp.ne.s32.totalorder %s130, %s144
      %p146 = scmp.eq.s32.totalorder %s38, 0
      %p147 = por %p145, %p146
      %s149 = sadd.s32 %s148, 1
      %p152 = scmp.eq.s32.totalorder %s32, 1
      %p153 = scmp.ne.s32.totalorder %s148, %s150
      %p154 = scmp.eq.s32.totalorder %s32, 0
      %p155 = por %p153, %p154
      %p156 = scmp.ne.s32.totalorder %s148, %s150
      %p157 = scmp.eq.s32.totalorder %s37, 1
      %p158 = por %p156, %p157
      %p159 = scmp.ne.s32.totalorder %s150, %s151
      %p160 = scmp.eq.s32.totalorder %s37, 0
      %p161 = por %p159, %p160
      %p162 = scmp.ne.s32.totalorder %s150, %s151
      %p163 = scmp.eq.s32.totalorder %s38, 1
      %p164 = por %p162, %p163
      %p166 = scmp.ne.s32.totalorder %s151, %s165
      %p167 = scmp.eq.s32.totalorder %s38, 0
      %p168 = por %p166, %p167
      %s170 = sadd.s32 %s169, 1
      %p173 = scmp.eq.s32.totalorder %s32, 1
      %p174 = scmp.ne.s32.totalorder %s169, %s171
      %p175 = scmp.eq.s32.totalorder %s32, 0
      %p176 = por %p174, %p175
      %p177 = scmp.ne.s32.totalorder %s169, %s171
      %p178 = scmp.eq.s32.totalorder %s37, 1
      %p179 = por %p177, %p178
      %p180 = scmp.ne.s32.totalorder %s171, %s172
      %p181 = scmp.eq.s32.totalorder %s37, 0
      %p182 = por %p180, %p181
      %p183 = scmp.ne.s32.totalorder %s171, %s172
      %p184 = scmp.eq.s32.totalorder %s38, 1
      %p185 = por %p183, %p184
      %p187 = scmp.ne.s32.totalorder %s172, %s186
      %p188 = scmp.eq.s32.totalorder %s38, 0
      %p189 = por %p187, %p188
      %s191 = sadd.s32 %s190, 1
      %p194 = scmp.eq.s32.totalorder %s32, 1
      %p195 = scmp.ne.s32.totalorder %s190, %s192
      %p196 = scmp.eq.s32.totalorder %s32, 0
      %p197 = por %p195, %p196
      %p198 = scmp.ne.s32.totalorder %s190, %s192
      %p199 = scmp.eq.s32.totalorder %s37, 1
      %p200 = por %p198, %p199
      %p201 = scmp.ne.s32.totalorder %s192, %s193
      %p202 = scmp.eq.s32.totalorder %s37, 0
      %p203 = por %p201, %p202
      %p204 = scmp.ne.s32.totalorder %s192, %s193
      %p205 = scmp.eq.s32.totalorder %s38, 1
      %p206 = por %p204, %p205
      %p208 = scmp.ne.s32.totalorder %s193, %s207
      %p209 = scmp.eq.s32.totalorder %s38, 0
      %p210 = por %p208, %p209
      %s212 = sadd.s32 %s211, 1
      %p215 = scmp.eq.s32.totalorder %s32, 1
      %p216 = scmp.ne.s32.totalorder %s211, %s213
      %p217 = scmp.eq.s32.totalorder %s32, 0
      %p218 = por %p216, %p217
      %p219 = scmp.ne.s32.totalorder %s211, %s213
      %p220 = scmp.eq.s32.totalorder %s37, 1
      %p221 = por %p219, %p220
      %p222 = scmp.ne.s32.totalorder %s213, %s214
      %p223 = scmp.eq.s32.totalorder %s37, 0
      %p224 = por %p222, %p223
      %p225 = scmp.ne.s32.totalorder %s213, %s214
      %p226 = scmp.eq.s32.totalorder %s38, 1
      %p227 = por %p225, %p226
      %p229 = scmp.ne.s32.totalorder %s214, %s228
      %p230 = scmp.eq.s32.totalorder %s38, 0
      %p231 = por %p229, %p230
      %s233 = sadd.s32 %s232, 1
      %p236 = scmp.eq.s32.totalorder %s32, 1
      %p237 = scmp.ne.s32.totalorder %s232, %s234
      %p238 = scmp.eq.s32.totalorder %s32, 0
      %p239 = por %p237, %p238
      %p240 = scmp.ne.s32.totalorder %s232, %s234
      %p241 = scmp.eq.s32.totalorder %s37, 1
      %p242 = por %p240, %p241
      %p243 = scmp.ne.s32.totalorder %s234, %s235
      %p244 = scmp.eq.s32.totalorder %s37, 0
      %p245 = por %p243, %p244
      %p246 = scmp.ne.s32.totalorder %s234, %s235
      %p247 = scmp.eq.s32.totalorder %s38, 1
      %p248 = por %p246, %p247
      %p250 = scmp.ne.s32.totalorder %s235, %s249
      %p251 = scmp.eq.s32.totalorder %s38, 0
      %p252 = por %p250, %p251
      %s254 = sadd.s32 %s253, 1
      %p257 = scmp.eq.s32.totalorder %s32, 1
      %p258 = scmp.ne.s32.totalorder %s253, %s255
      %p259 = scmp.eq.s32.totalorder %s32, 0
      %p260 = por %p258, %p259
      %p261 = scmp.ne.s32.totalorder %s253, %s255
      %p262 = scmp.eq.s32.totalorder %s37, 1
      %p263 = por %p261, %p262
      %p264 = scmp.ne.s32.totalorder %s255, %s256
      %p265 = scmp.eq.s32.totalorder %s37, 0
      %p266 = por %p264, %p265
      %p267 = scmp.ne.s32.totalorder %s255, %s256
      %p268 = scmp.eq.s32.totalorder %s38, 1
      %p269 = por %p267, %p268
      %p271 = scmp.ne.s32.totalorder %s256, %s270
      %p272 = scmp.eq.s32.totalorder %s38, 0
      %p273 = por %p271, %p272
      %s274 = ssub.s32 %s40, %s47
      %s275 = ssub.s32 %s39, %s51
      %s276 = sor.u32 %s274, %s275
      %p277 = scmp.eq.s32.totalorder %s276, 0
      %s279 = sadd.s32 %s278, 1
      %s280 = scalar_select %p277, %s278, %s279
      %p283 = pneg %p277
      %p284 = scmp.eq.s32.totalorder %s32, 1
      %p285 = por %p283, %p284
      %p286 = scmp.ne.s32.totalorder %s278, %s281
      %p287 = scmp.eq.s32.totalorder %s32, 0
      %p288 = por %p286, %p287
      %p289 = scmp.ne.s32.totalorder %s278, %s281
      %p290 = scmp.eq.s32.totalorder %s37, 1
      %p291 = por %p289, %p290
      %p292 = scmp.ne.s32.totalorder %s281, %s282
      %p293 = scmp.eq.s32.totalorder %s37, 0
      %p294 = por %p292, %p293
      %p295 = scmp.ne.s32.totalorder %s281, %s282
      %p296 = scmp.eq.s32.totalorder %s38, 1
      %p297 = por %p295, %p296
      %p299 = scmp.ne.s32.totalorder %s282, %s298
      %p300 = scmp.eq.s32.totalorder %s38, 0
      %p301 = por %p299, %p300
      %s302 = ssub.s32 %s39, %s51
      %p303 = scmp.eq.s32.totalorder %s302, 0
      %s305 = sadd.s32 %s304, 1
      %s306 = scalar_select %p303, %s304, %s305
      %p309 = pneg %p303
      %p310 = scmp.eq.s32.totalorder %s32, 1
      %p311 = por %p309, %p310
      %p312 = scmp.ne.s32.totalorder %s304, %s307
      %p313 = scmp.eq.s32.totalorder %s32, 0
      %p314 = por %p312, %p313
      %p315 = scmp.ne.s32.totalorder %s304, %s307
      %p316 = scmp.eq.s32.totalorder %s37, 1
      %p317 = por %p315, %p316
      %p318 = scmp.ne.s32.totalorder %s307, %s308
      %p319 = scmp.eq.s32.totalorder %s37, 0
      %p320 = por %p318, %p319
      %p321 = scmp.ne.s32.totalorder %s307, %s308
      %p322 = scmp.eq.s32.totalorder %s38, 1
      %p323 = por %p321, %p322
      %p325 = scmp.ne.s32.totalorder %s308, %s324
      %p326 = scmp.eq.s32.totalorder %s38, 0
      %p327 = por %p325, %p326
      %p328 = scmp.le.s32.totalorder 1, %s32
      %p329 = scmp.lt.s32.totalorder %s32, 3
      %p330 = pnand %p328, %p329
      %p331 = pneg %p330
      // Predicated region
      $region9: #{tpu_custom_call.1} parent=5 // pred_check
        _
      $region10: #{tpu_custom_call.1} parent=5 // pred_check_branch
        %333 = sbr.rel (%p330) target = $region12
      $region11: #{tpu_custom_call.1} parent=5 // pred_region
        %s334 = ssub.s32 %s32, 1
        // Predicated region
        $region13: #{tpu_custom_call.1} parent=11 // pred_check
          %p335 = pneg %p119
        $region14: #{tpu_custom_call.1} parent=11 // pred_check_branch
          %337 = sbr.rel (%p335) target = $region16
        $region15: #{tpu_custom_call.1} parent=11 // pred_region
          %s339 = ssub.s32 2048, 2048
          %340 = vsyncadd [#allocation9], %s339
          %s341 = sshll.u32 [#allocation10], 4
          %s342 = int_to_ptr.vmem [resolvable:$true] %s341
          %347 = dma.hbm_to_vmem [thread:$0]  %s2, 2048, %s342, [#allocation9], 128, 128, 8
        $region16: #{tpu_custom_call.1} parent=11 // pred_fallthru
          _
        // Predicated region
        $region17: #{tpu_custom_call.1} parent=11 // pred_check
          %p348 = pneg %p140
        $region18: #{tpu_custom_call.1} parent=11 // pred_check_branch
          %350 = sbr.rel (%p348) target = $region20
        $region19: #{tpu_custom_call.1} parent=11 // pred_region
          _
        $region20: #{tpu_custom_call.1} parent=11 // pred_fallthru
          _
        // Predicated region
        $region21: #{tpu_custom_call.1} parent=11 // pred_check
          %p351 = pneg %p161
        $region22: #{tpu_custom_call.1} parent=11 // pred_check_branch
          %353 = sbr.rel (%p351) target = $region24
        $region23: #{tpu_custom_call.1} parent=11 // pred_region
          %s355 = ssub.s32 12288, 12288
          %356 = vsyncadd [#allocation12], %s355
          %s357 = sshll.u32 [#allocation11], 4
          %s358 = int_to_ptr.vmem [resolvable:$true] %s357
          %363 = dma.hbm_to_vmem [thread:$0]  %s4, 12288, %s358, [#allocation12], 384, 384, 24
        $region24: #{tpu_custom_call.1} parent=11 // pred_fallthru
          _
        // Predicated region
        $region25: #{tpu_custom_call.1} parent=11 // pred_check
          %p364 = pneg %p182
        $region26: #{tpu_custom_call.1} parent=11 // pred_check_branch
          %366 = sbr.rel (%p364) target = $region28
        $region27: #{tpu_custom_call.1} parent=11 // pred_region
          _
        $region28: #{tpu_custom_call.1} parent=11 // pred_fallthru
          _
        // Predicated region
        $region29: #{tpu_custom_call.1} parent=11 // pred_check
          %p367 = pneg %p203
        $region30: #{tpu_custom_call.1} parent=11 // pred_check_branch
          %369 = sbr.rel (%p367) target = $region32
        $region31: #{tpu_custom_call.1} parent=11 // pred_region
          %s371 = ssub.s32 12288, 12288
          %372 = vsyncadd [#allocation12], %s371
          %s373 = sshll.u32 [#allocation13], 4
          %s374 = int_to_ptr.vmem [resolvable:$true] %s373
          %379 = dma.hbm_to_vmem [thread:$0]  %s6, 12288, %s374, [#allocation12], 384, 384, 24
        $region32: #{tpu_custom_call.1} parent=11 // pred_fallthru
          _
        // Predicated region
        $region33: #{tpu_custom_call.1} parent=11 // pred_check
          %p380 = pneg %p224
        $region34: #{tpu_custom_call.1} parent=11 // pred_check_branch
          %382 = sbr.rel (%p380) target = $region36
        $region35: #{tpu_custom_call.1} parent=11 // pred_region
          _
        $region36: #{tpu_custom_call.1} parent=11 // pred_fallthru
          _
        // Predicated region
        $region37: #{tpu_custom_call.1} parent=11 // pred_check
          %p383 = pneg %p245
        $region38: #{tpu_custom_call.1} parent=11 // pred_check_branch
          %385 = sbr.rel (%p383) target = $region40
        $region39: #{tpu_custom_call.1} parent=11 // pred_region
          %s387 = ssub.s32 2048, 2048
          %388 = vsyncadd [#allocation15], %s387
          %s389 = sshll.u32 [#allocation14], 4
          %s390 = int_to_ptr.vmem [resolvable:$true] %s389
          %395 = dma.hbm_to_vmem [thread:$0]  %s8, 2048, %s390, [#allocation15], 64, 64, 4
        $region40: #{tpu_custom_call.1} parent=11 // pred_fallthru
          _
        // Predicated region
        $region41: #{tpu_custom_call.1} parent=11 // pred_check
          %p396 = pneg %p266
        $region42: #{tpu_custom_call.1} parent=11 // pred_check_branch
          %398 = sbr.rel (%p396) target = $region44
        $region43: #{tpu_custom_call.1} parent=11 // pred_region
          _
        $region44: #{tpu_custom_call.1} parent=11 // pred_fallthru
          _
      $region12: #{tpu_custom_call.1} parent=5 // pred_fallthru
        _
      %p399 = scmp.lt.s32.totalorder %s32, 2
      // Predicated region
      $region45: #{tpu_custom_call.1} parent=5 // pred_check
        %p400 = pneg %p399
      $region46: #{tpu_custom_call.1} parent=5 // pred_check_branch
        %402 = sbr.rel (%p400) target = $region48
      $region47: #{tpu_custom_call.1} parent=5 // pred_region
        // Predicated region
        $region49: #{tpu_custom_call.1} parent=47 // pred_check
          %p403 = pneg %p66
        $region50: #{tpu_custom_call.1} parent=47 // pred_check_branch
          %405 = sbr.rel (%p403) target = $region52
        $region51: #{tpu_custom_call.1} parent=47 // pred_region
          %s406 = sand.u32 %s56, 1
          %s407 = scalar_lea.sflag [#allocation6], %s406
          %s408 = sand.u32 %s56, 1
          %s409 = smul.addr %s408, 16
          %s410 = scalar_lea.vmem [#allocation5], %s409
          %s411 = smul.u32 4, %s39
          %s413 = ssub.s32 256, 256
          %414 = vsyncadd %s407, %s413
          %s415 = smul.addr %s40, 8
          %s416 = sadd.s32 %s411, %s415
          %s417 = smul.addr %s416, 64
          %s418 = scalar_lea.hbm %s0, %s417
          %s419 = sshll.u32 %s410, 4
          %s420 = int_to_ptr.vmem [resolvable:$true] %s419
          %425 = dma.hbm_to_vmem [thread:$0]  %s418, 256, %s420, %s407, 64, 64, 4
        $region52: #{tpu_custom_call.1} parent=47 // pred_fallthru
          _
        // Predicated region
        $region53: #{tpu_custom_call.1} parent=47 // pred_check
          %p426 = pneg %p92
        $region54: #{tpu_custom_call.1} parent=47 // pred_check_branch
          %428 = sbr.rel (%p426) target = $region56
        $region55: #{tpu_custom_call.1} parent=47 // pred_region
          %s429 = sand.u32 %s32, 1
          %s430 = scalar_lea.sflag [#allocation9], %s429
          %s431 = sand.u32 %s82, 1
          %s432 = smul.addr %s431, 64
          %s433 = scalar_lea.vmem [#allocation8], %s432
          %s434 = smul.u32 4, %s39
          %s436 = ssub.s32 1024, 1024
          %437 = vsyncadd %s430, %s436
          %s438 = smul.addr %s434, 2
          %s439 = smul.addr %s438, 128
          %s440 = scalar_lea.hbm %s1, %s439
          %s441 = sshll.u32 %s433, 4
          %s442 = int_to_ptr.vmem [resolvable:$true] %s441
          %447 = dma.hbm_to_vmem [thread:$0]  %s440, 1024, %s442, %s430, 256, 256, 16
        $region56: #{tpu_custom_call.1} parent=47 // pred_fallthru
          _
      $region48: #{tpu_custom_call.1} parent=5 // pred_fallthru
        _
      %p448 = scmp.le.s32.totalorder 1, %s32
      %p449 = scmp.lt.s32.totalorder %s32, 3
      %p450 = pnand %p448, %p449
      %p451 = pneg %p450
      // Predicated region
      $region57: #{tpu_custom_call.1} parent=5 // pred_check
        _
      $region58: #{tpu_custom_call.1} parent=5 // pred_check_branch
        %453 = sbr.rel (%p450) target = $region60
      $region59: #{tpu_custom_call.1} parent=5 // pred_region
        %s454 = ssub.s32 %s32, 1
        %s455 = sand.u32 %s59, 1
        %s456 = scalar_lea.sflag [#allocation6], %s455
        %s457 = sand.u32 %s59, 1
        %s458 = smul.addr %s457, 16
        %s459 = scalar_lea.vmem [#allocation5], %s458
        // Predicated region
        $region61: #{tpu_custom_call.1} parent=59 // pred_check
          %p460 = pneg %p72
        $region62: #{tpu_custom_call.1} parent=59 // pred_check_branch
          %462 = sbr.rel (%p460) target = $region64
        $region63: #{tpu_custom_call.1} parent=59 // pred_region
          %463 = dma.done %s456, 256
        $region64: #{tpu_custom_call.1} parent=59 // pred_fallthru
          _
        %s464 = sand.u32 %s37, 1
        %s465 = scalar_lea.sflag [#allocation9], %s464
        %s466 = sand.u32 %s85, 1
        %s467 = smul.addr %s466, 64
        %s468 = scalar_lea.vmem [#allocation8], %s467
        // Predicated region
        $region65: #{tpu_custom_call.1} parent=59 // pred_check
          %p469 = pneg %p98
        $region66: #{tpu_custom_call.1} parent=59 // pred_check_branch
          %471 = sbr.rel (%p469) target = $region68
        $region67: #{tpu_custom_call.1} parent=59 // pred_region
          %472 = dma.done %s465, 1024
        $region68: #{tpu_custom_call.1} parent=59 // pred_fallthru
          _
        // Predicated region
        $region69: #{tpu_custom_call.1} parent=59 // pred_check
          %p473 = pneg %p119
        $region70: #{tpu_custom_call.1} parent=59 // pred_check_branch
          %475 = sbr.rel (%p473) target = $region72
        $region71: #{tpu_custom_call.1} parent=59 // pred_region
          %476 = dma.done [#allocation9], 2048
        $region72: #{tpu_custom_call.1} parent=59 // pred_fallthru
          _
        // Predicated region
        $region73: #{tpu_custom_call.1} parent=59 // pred_check
          %p477 = pneg %p161
        $region74: #{tpu_custom_call.1} parent=59 // pred_check_branch
          %479 = sbr.rel (%p477) target = $region76
        $region75: #{tpu_custom_call.1} parent=59 // pred_region
          %480 = dma.done [#allocation12], 12288
        $region76: #{tpu_custom_call.1} parent=59 // pred_fallthru
          _
        // Predicated region
        $region77: #{tpu_custom_call.1} parent=59 // pred_check
          %p481 = pneg %p203
        $region78: #{tpu_custom_call.1} parent=59 // pred_check_branch
          %483 = sbr.rel (%p481) target = $region80
        $region79: #{tpu_custom_call.1} parent=59 // pred_region
          %484 = dma.done [#allocation12], 12288
        $region80: #{tpu_custom_call.1} parent=59 // pred_fallthru
          _
        // Predicated region
        $region81: #{tpu_custom_call.1} parent=59 // pred_check
          %p485 = pneg %p245
        $region82: #{tpu_custom_call.1} parent=59 // pred_check_branch
          %487 = sbr.rel (%p485) target = $region84
        $region83: #{tpu_custom_call.1} parent=59 // pred_region
          %488 = dma.done [#allocation15], 2048
        $region84: #{tpu_custom_call.1} parent=59 // pred_fallthru
          _
        %s489 = sand.u32 %s59, 1
        %s490 = scalar_lea.sflag [#allocation6], %s489
        %s491 = sand.u32 %s59, 1
        %s492 = smul.addr %s491, 16
        %s493 = scalar_lea.vmem [#allocation5], %s492
        %p494 = pneg %p72
        %p495 = pneg %p69
        %s496 = sand.u32 %s37, 1
        %s497 = scalar_lea.sflag [#allocation9], %s496
        %s498 = sand.u32 %s85, 1
        %s499 = smul.addr %s498, 64
        %s500 = scalar_lea.vmem [#allocation8], %s499
        %p501 = pneg %p98
        %p502 = pneg %p95
        %p503 = pneg %p119
        %p504 = pneg %p116
        %p505 = pneg %p140
        %p506 = pneg %p137
        %p507 = pneg %p161
        %p508 = pneg %p158
        %p509 = pneg %p182
        %p510 = pneg %p179
        %p511 = pneg %p203
        %p512 = pneg %p200
        %p513 = pneg %p224
        %p514 = pneg %p221
        %p515 = pneg %p245
        %p516 = pneg %p242
        %p517 = pneg %p266
        %p518 = pneg %p263
        %p519 = pneg %p294
        %p520 = pneg %p291
        %s521 = sand.u32 %s281, 1
        %s522 = scalar_lea.sflag [#allocation7], %s521
        %s523 = sand.u32 %s281, 1
        %s524 = smul.addr %s523, 32
        %s525 = scalar_lea.vmem [#allocation16], %s524
        %p526 = pneg %p320
        %p527 = pneg %p317
        %s528 = sand.u32 %s307, 1
        %s529 = scalar_lea.sflag [#allocation18], %s528
        %s530 = sand.u32 %s307, 1
        %s531 = smul.addr %s530, 64
        %s532 = scalar_lea.vmem [#allocation17], %s531
        %s533 = smul.u32 4, %s41
        %s534 = smul.u32 4, %s41
        %s535 = smul.u32 4, %s41
        %s536 = smul.u32 4, %s41
        %p538 = scmp.eq.s32.totalorder %s42, 0
        // Predicated region
        $region85: #{tpu_custom_call.1} parent=59 // pred_check
          %p539 = pneg %p538
        $region86: #{tpu_custom_call.1} parent=59 // pred_check_branch
          %541 = sbr.rel (%p539) target = $region88
        $region87: #{tpu_custom_call.1} parent=59 // pred_region
          %v542 = vld [vmem:[%s468] sm:$0xff]
          %v543 = vld [vmem:[%s468 + $0x8] sm:$0xff]
          %v544 = vld [vmem:[%s468 + $0x10] sm:$0xff]
          %v545 = vld [vmem:[%s468 + $0x18] sm:$0xff]
          %v546 = vld [vmem:[%s468 + $0x20] sm:$0xff]
          %v547 = vld [vmem:[%s468 + $0x28] sm:$0xff]
          %v548 = vld [vmem:[%s468 + $0x30] sm:$0xff]
          %v549 = vld [vmem:[%s468 + $0x38] sm:$0xff]
          %550 = vst [vmem:[#allocation2] sm:$0xff] %v542
          %551 = vst [vmem:[#allocation2 + $0x8] sm:$0xff] %v543
          %552 = vst [vmem:[#allocation2 + $0x10] sm:$0xff] %v544
          %553 = vst [vmem:[#allocation2 + $0x18] sm:$0xff] %v545
          %554 = vst [vmem:[#allocation2 + $0x20] sm:$0xff] %v546
          %555 = vst [vmem:[#allocation2 + $0x28] sm:$0xff] %v547
          %556 = vst [vmem:[#allocation2 + $0x30] sm:$0xff] %v548
          %557 = vst [vmem:[#allocation2 + $0x38] sm:$0xff] %v549
        $region88: #{tpu_custom_call.1} parent=59 // pred_fallthru
          _
        %v558 = vld [vmem:[%s459] sm:$0xf]
        %v559 = vld [vmem:[%s459 + $0x4] sm:$0xf]
        %v560 = vld [vmem:[%s459 + $0x8] sm:$0xf]
        %v561 = vld [vmem:[%s459 + $0xc] sm:$0xf]
        %v562 = vld [vmem:[#allocation10] sm:$0xff]
        %v563 = vld [vmem:[#allocation10 + $0x8] sm:$0xff]
        %v564 = vld [vmem:[#allocation10 + $0x10] sm:$0xff]
        %v565 = vld [vmem:[#allocation10 + $0x18] sm:$0xff]
        %v566 = vld [vmem:[#allocation10 + $0x20] sm:$0xff]
        %v567 = vld [vmem:[#allocation10 + $0x28] sm:$0xff]
        %v568 = vld [vmem:[#allocation10 + $0x30] sm:$0xff]
        %v569 = vld [vmem:[#allocation10 + $0x38] sm:$0xff]
        %v570 = vld [vmem:[#allocation10 + $0x40] sm:$0xff]
        %v571 = vld [vmem:[#allocation10 + $0x48] sm:$0xff]
        %v572 = vld [vmem:[#allocation10 + $0x50] sm:$0xff]
        %v573 = vld [vmem:[#allocation10 + $0x58] sm:$0xff]
        %v574 = vld [vmem:[#allocation10 + $0x60] sm:$0xff]
        %v575 = vld [vmem:[#allocation10 + $0x68] sm:$0xff]
        %v576 = vld [vmem:[#allocation10 + $0x70] sm:$0xff]
        %v577 = vld [vmem:[#allocation10 + $0x78] sm:$0xff]
        %v578 = vld [vmem:[%s3] sm:$0x3]
        %v580 = vlaneseq
        %v581 = vshrl.u32 %v580, 7
        %v582 = vsub.s32 0, %v581
        %v583 = vrot.slane %v578, %v582
        %v584 = vlaneseq
        %v585 = vshrl.u32 %v584, 7
        %v586 = vsub.s32 1, %v585
        %v587 = vrot.slane %v578, %v586
        %v594 = vunpack.c.l.b16 %v558
        %v595 = vunpack.c.l.b16 %v559
        %v596 = vunpack.c.l.b16 %v560
        %v597 = vunpack.c.l.b16 %v561
        %v598 = vpack.c.b16 %v595, %v594
        %v599 = vpack.c.b16 %v597, %v596
        %v618 = vunpack.c.l.b16 %v562
        %v619 = vunpack.c.h.b16 %v562
        %v620 = vunpack.c.l.b16 %v563
        %v621 = vunpack.c.h.b16 %v563
        %v622 = vunpack.c.l.b16 %v564
        %v623 = vunpack.c.h.b16 %v564
        %v624 = vunpack.c.l.b16 %v565
        %v625 = vunpack.c.h.b16 %v565
        %v626 = vunpack.c.l.b16 %v566
        %v627 = vunpack.c.h.b16 %v566
        %v628 = vunpack.c.l.b16 %v567
        %v629 = vunpack.c.h.b16 %v567
        %v630 = vunpack.c.l.b16 %v568
        %v631 = vunpack.c.h.b16 %v568
        %v632 = vunpack.c.l.b16 %v569
        %v633 = vunpack.c.h.b16 %v569
        %v634 = vunpack.c.l.b16 %v570
        %v635 = vunpack.c.h.b16 %v570
        %v636 = vunpack.c.l.b16 %v571
        %v637 = vunpack.c.h.b16 %v571
        %v638 = vunpack.c.l.b16 %v572
        %v639 = vunpack.c.h.b16 %v572
        %v640 = vunpack.c.l.b16 %v573
        %v641 = vunpack.c.h.b16 %v573
        %v642 = vunpack.c.l.b16 %v574
        %v643 = vunpack.c.h.b16 %v574
        %v644 = vunpack.c.l.b16 %v575
        %v645 = vunpack.c.h.b16 %v575
        %v646 = vunpack.c.l.b16 %v576
        %v647 = vunpack.c.h.b16 %v576
        %v648 = vunpack.c.l.b16 %v577
        %v649 = vunpack.c.h.b16 %v577
        %v650 = vpack.c.b16 %v620, %v618
        %v651 = vpack.c.b16 %v621, %v619
        %v652 = vpack.c.b16 %v624, %v622
        %v653 = vpack.c.b16 %v625, %v623
        %v654 = vpack.c.b16 %v628, %v626
        %v655 = vpack.c.b16 %v629, %v627
        %v656 = vpack.c.b16 %v632, %v630
        %v657 = vpack.c.b16 %v633, %v631
        %v658 = vpack.c.b16 %v636, %v634
        %v659 = vpack.c.b16 %v637, %v635
        %v660 = vpack.c.b16 %v640, %v638
        %v661 = vpack.c.b16 %v641, %v639
        %v662 = vpack.c.b16 %v644, %v642
        %v663 = vpack.c.b16 %v645, %v643
        %v664 = vpack.c.b16 %v648, %v646
        %v665 = vpack.c.b16 %v649, %v647
        %682 = vmatprep.subr.bf16.mxu0 %v665
        %683 = vmatpush1.bf16.msra.mxu0 %v664
        %684 = vmatprep.subr.bf16.mxu0 %v663
        %685 = vmatpush1.bf16.msra.mxu0 %v662
        %686 = vmatprep.subr.bf16.mxu0 %v661
        %687 = vmatpush1.bf16.msra.mxu0 %v660
        %688 = vmatprep.subr.bf16.mxu0 %v659
        %689 = vmatpush1.bf16.msra.mxu0 %v658
        %690 = vmatprep.subr.bf16.mxu0 %v657
        %691 = vmatpush1.bf16.msra.mxu0 %v656
        %692 = vmatprep.subr.bf16.mxu0 %v655
        %693 = vmatpush1.bf16.msra.mxu0 %v654
        %694 = vmatprep.subr.bf16.mxu0 %v653
        %695 = vmatpush1.bf16.msra.mxu0 %v652
        %696 = vmatprep.subr.bf16.mxu0 %v651
        %697 = vmatpush1.bf16.msra.mxu0 %v650
        %698 = vmatprep.subr.bf16.mxu0 0
        %699 = vmatpush2.bf16.msra.mxu0 0
        %700 = vmatprep.subr.bf16.mxu0 0
        %701 = vmatpush2.bf16.msra.mxu0 0
        %702 = vmatprep.subr.bf16.mxu0 0
        %703 = vmatpush2.bf16.msra.mxu0 0
        %704 = vmatprep.subr.bf16.mxu0 0
        %705 = vmatpush2.bf16.msra.mxu0 0
        %706 = vmatprep.subr.bf16.mxu0 0
        %707 = vmatpush2.bf16.msra.mxu0 0
        %708 = vmatprep.subr.bf16.mxu0 0
        %709 = vmatpush2.bf16.msra.mxu0 0
        %710 = vmatprep.subr.bf16.mxu0 0
        %711 = vmatpush2.bf16.msra.mxu0 0
        %712 = vmatprep.subr.bf16.mxu0 0
        %713 = vmatpush2.bf16.msra.mxu0 0
        %714 = vmatprep.mubr.bf16.mxu0 0
        %715 = vmatmul.mubr.bf16.gmra.mxu0 %v598
        %v716 = vpop.f32.mrf.mxu0
        %v717 = vadd.f32 %v583, %v716
        %v718 = vpop.f32.mrf.mxu0
        %v719 = vadd.f32 %v587, %v718
        %v720 = vpop.f32.mrf.mxu0
        %v721 = vadd.f32 %v583, %v720
        %v722 = vpop.f32.mrf.mxu0
        %v723 = vadd.f32 %v587, %v722
        %724 = vmatprep.mubr.bf16.mxu0 0
        %725 = vmatmul.mubr.bf16.gmra.mxu0 %v599
        %v726 = vpop.f32.mrf.mxu0
        %v727 = vadd.f32 %v583, %v726
        %v728 = vpop.f32.mrf.mxu0
        %v729 = vadd.f32 %v587, %v728
        %v730 = vpop.f32.mrf.mxu0
        %v731 = vadd.f32 %v583, %v730
        %v732 = vpop.f32.mrf.mxu0
        %v733 = vadd.f32 %v587, %v732
        %734 = vdwg.mxu0
        %v735 = vmax.f32 %v717, 0.0
        %v736 = vmax.f32 %v719, 0.0
        %v737 = vmax.f32 %v721, 0.0
        %v738 = vmax.f32 %v723, 0.0
        %v739 = vmax.f32 %v727, 0.0
        %v740 = vmax.f32 %v729, 0.0
        %v741 = vmax.f32 %v731, 0.0
        %v742 = vmax.f32 %v733, 0.0
        %v743 = vpack.c.bf16 %v737, %v735
        %v744 = vpack.c.bf16 %v738, %v736
        %v745 = vpack.c.bf16 %v741, %v739
        %v746 = vpack.c.bf16 %v742, %v740
        %v747 = vld [vmem:[#allocation11] sm:$0xff]
        %v748 = vld [vmem:[#allocation11 + $0x8] sm:$0xff]
        %v749 = vld [vmem:[#allocation11 + $0x10] sm:$0xff]
        %v750 = vld [vmem:[#allocation11 + $0x18] sm:$0xff]
        %v751 = vld [vmem:[#allocation11 + $0x20] sm:$0xff]
        %v752 = vld [vmem:[#allocation11 + $0x28] sm:$0xff]
        %v753 = vld [vmem:[#allocation11 + $0x30] sm:$0xff]
        %v754 = vld [vmem:[#allocation11 + $0x38] sm:$0xff]
        %v755 = vld [vmem:[#allocation11 + $0x40] sm:$0xff]
        %v756 = vld [vmem:[#allocation11 + $0x48] sm:$0xff]
        %v757 = vld [vmem:[#allocation11 + $0x50] sm:$0xff]
        %v758 = vld [vmem:[#allocation11 + $0x58] sm:$0xff]
        %v759 = vld [vmem:[#allocation11 + $0x60] sm:$0xff]
        %v760 = vld [vmem:[#allocation11 + $0x68] sm:$0xff]
        %v761 = vld [vmem:[#allocation11 + $0x70] sm:$0xff]
        %v762 = vld [vmem:[#allocation11 + $0x78] sm:$0xff]
        %v763 = vld [vmem:[#allocation11 + $0x80] sm:$0xff]
        %v764 = vld [vmem:[#allocation11 + $0x88] sm:$0xff]
        %v765 = vld [vmem:[#allocation11 + $0x90] sm:$0xff]
        %v766 = vld [vmem:[#allocation11 + $0x98] sm:$0xff]
        %v767 = vld [vmem:[#allocation11 + $0xa0] sm:$0xff]
        %v768 = vld [vmem:[#allocation11 + $0xa8] sm:$0xff]
        %v769 = vld [vmem:[#allocation11 + $0xb0] sm:$0xff]
        %v770 = vld [vmem:[#allocation11 + $0xb8] sm:$0xff]
        %v771 = vld [vmem:[#allocation11 + $0xc0] sm:$0xff]
        %v772 = vld [vmem:[#allocation11 + $0xc8] sm:$0xff]
        %v773 = vld [vmem:[#allocation11 + $0xd0] sm:$0xff]
        %v774 = vld [vmem:[#allocation11 + $0xd8] sm:$0xff]
        %v775 = vld [vmem:[#allocation11 + $0xe0] sm:$0xff]
        %v776 = vld [vmem:[#allocation11 + $0xe8] sm:$0xff]
        %v777 = vld [vmem:[#allocation11 + $0xf0] sm:$0xff]
        %v778 = vld [vmem:[#allocation11 + $0xf8] sm:$0xff]
        %v779 = vld [vmem:[#allocation11 + $0x100] sm:$0xff]
        %v780 = vld [vmem:[#allocation11 + $0x108] sm:$0xff]
        %v781 = vld [vmem:[#allocation11 + $0x110] sm:$0xff]
        %v782 = vld [vmem:[#allocation11 + $0x118] sm:$0xff]
        %v783 = vld [vmem:[#allocation11 + $0x120] sm:$0xff]
        %v784 = vld [vmem:[#allocation11 + $0x128] sm:$0xff]
        %v785 = vld [vmem:[#allocation11 + $0x130] sm:$0xff]
        %v786 = vld [vmem:[#allocation11 + $0x138] sm:$0xff]
        %v787 = vld [vmem:[#allocation11 + $0x140] sm:$0xff]
        %v788 = vld [vmem:[#allocation11 + $0x148] sm:$0xff]
        %v789 = vld [vmem:[#allocation11 + $0x150] sm:$0xff]
        %v790 = vld [vmem:[#allocation11 + $0x158] sm:$0xff]
        %v791 = vld [vmem:[#allocation11 + $0x160] sm:$0xff]
        %v792 = vld [vmem:[#allocation11 + $0x168] sm:$0xff]
        %v793 = vld [vmem:[#allocation11 + $0x170] sm:$0xff]
        %v794 = vld [vmem:[#allocation11 + $0x178] sm:$0xff]
        %v795 = vld [vmem:[#allocation11 + $0x180] sm:$0xff]
        %v796 = vld [vmem:[#allocation11 + $0x188] sm:$0xff]
        %v797 = vld [vmem:[#allocation11 + $0x190] sm:$0xff]
        %v798 = vld [vmem:[#allocation11 + $0x198] sm:$0xff]
        %v799 = vld [vmem:[#allocation11 + $0x1a0] sm:$0xff]
        %v800 = vld [vmem:[#allocation11 + $0x1a8] sm:$0xff]
        %v801 = vld [vmem:[#allocation11 + $0x1b0] sm:$0xff]
        %v802 = vld [vmem:[#allocation11 + $0x1b8] sm:$0xff]
        %v803 = vld [vmem:[#allocation11 + $0x1c0] sm:$0xff]
        %v804 = vld [vmem:[#allocation11 + $0x1c8] sm:$0xff]
        %v805 = vld [vmem:[#allocation11 + $0x1d0] sm:$0xff]
        %v806 = vld [vmem:[#allocation11 + $0x1d8] sm:$0xff]
        %v807 = vld [vmem:[#allocation11 + $0x1e0] sm:$0xff]
        %v808 = vld [vmem:[#allocation11 + $0x1e8] sm:$0xff]
        %v809 = vld [vmem:[#allocation11 + $0x1f0] sm:$0xff]
        %v810 = vld [vmem:[#allocation11 + $0x1f8] sm:$0xff]
        %v811 = vld [vmem:[#allocation11 + $0x200] sm:$0xff]
        %v812 = vld [vmem:[#allocation11 + $0x208] sm:$0xff]
        %v813 = vld [vmem:[#allocation11 + $0x210] sm:$0xff]
        %v814 = vld [vmem:[#allocation11 + $0x218] sm:$0xff]
        %v815 = vld [vmem:[#allocation11 + $0x220] sm:$0xff]
        %v816 = vld [vmem:[#allocation11 + $0x228] sm:$0xff]
        %v817 = vld [vmem:[#allocation11 + $0x230] sm:$0xff]
        %v818 = vld [vmem:[#allocation11 + $0x238] sm:$0xff]
        %v819 = vld [vmem:[#allocation11 + $0x240] sm:$0xff]
        %v820 = vld [vmem:[#allocation11 + $0x248] sm:$0xff]
        %v821 = vld [vmem:[#allocation11 + $0x250] sm:$0xff]
        %v822 = vld [vmem:[#allocation11 + $0x258] sm:$0xff]
        %v823 = vld [vmem:[#allocation11 + $0x260] sm:$0xff]
        %v824 = vld [vmem:[#allocation11 + $0x268] sm:$0xff]
        %v825 = vld [vmem:[#allocation11 + $0x270] sm:$0xff]
        %v826 = vld [vmem:[#allocation11 + $0x278] sm:$0xff]
        %v827 = vld [vmem:[#allocation11 + $0x280] sm:$0xff]
        %v828 = vld [vmem:[#allocation11 + $0x288] sm:$0xff]
        %v829 = vld [vmem:[#allocation11 + $0x290] sm:$0xff]
        %v830 = vld [vmem:[#allocation11 + $0x298] sm:$0xff]
        %v831 = vld [vmem:[#allocation11 + $0x2a0] sm:$0xff]
        %v832 = vld [vmem:[#allocation11 + $0x2a8] sm:$0xff]
        %v833 = vld [vmem:[#allocation11 + $0x2b0] sm:$0xff]
        %v834 = vld [vmem:[#allocation11 + $0x2b8] sm:$0xff]
        %v835 = vld [vmem:[#allocation11 + $0x2c0] sm:$0xff]
        %v836 = vld [vmem:[#allocation11 + $0x2c8] sm:$0xff]
        %v837 = vld [vmem:[#allocation11 + $0x2d0] sm:$0xff]
        %v838 = vld [vmem:[#allocation11 + $0x2d8] sm:$0xff]
        %v839 = vld [vmem:[#allocation11 + $0x2e0] sm:$0xff]
        %v840 = vld [vmem:[#allocation11 + $0x2e8] sm:$0xff]
        %v841 = vld [vmem:[#allocation11 + $0x2f0] sm:$0xff]
        %v842 = vld [vmem:[#allocation11 + $0x2f8] sm:$0xff]
        %v843 = vld [vmem:[%s5] sm:$0x3f]
        %v845 = vlaneseq
        %v846 = vshrl.u32 %v845, 7
        %v847 = vsub.s32 0, %v846
        %v848 = vrot.slane %v843, %v847
        %v849 = vlaneseq
        %v850 = vshrl.u32 %v849, 7
        %v851 = vsub.s32 1, %v850
        %v852 = vrot.slane %v843, %v851
        %v853 = vlaneseq
        %v854 = vshrl.u32 %v853, 7
        %v855 = vsub.s32 2, %v854
        %v856 = vrot.slane %v843, %v855
        %v857 = vlaneseq
        %v858 = vshrl.u32 %v857, 7
        %v859 = vsub.s32 3, %v858
        %v860 = vrot.slane %v843, %v859
        %v861 = vlaneseq
        %v862 = vshrl.u32 %v861, 7
        %v863 = vsub.s32 4, %v862
        %v864 = vrot.slane %v843, %v863
        %v865 = vlaneseq
        %v866 = vshrl.u32 %v865, 7
        %v867 = vsub.s32 5, %v866
        %v868 = vrot.slane %v843, %v867
        %v971 = vunpack.c.l.b16 %v747
        %v972 = vunpack.c.h.b16 %v747
        %v973 = vunpack.c.l.b16 %v748
        %v974 = vunpack.c.h.b16 %v748
        %v975 = vunpack.c.l.b16 %v749
        %v976 = vunpack.c.h.b16 %v749
        %v977 = vunpack.c.l.b16 %v750
        %v978 = vunpack.c.h.b16 %v750
        %v979 = vunpack.c.l.b16 %v751
        %v980 = vunpack.c.h.b16 %v751
        %v981 = vunpack.c.l.b16 %v752
        %v982 = vunpack.c.h.b16 %v752
        %v983 = vunpack.c.l.b16 %v753
        %v984 = vunpack.c.h.b16 %v753
        %v985 = vunpack.c.l.b16 %v754
        %v986 = vunpack.c.h.b16 %v754
        %v987 = vunpack.c.l.b16 %v755
        %v988 = vunpack.c.h.b16 %v755
        %v989 = vunpack.c.l.b16 %v756
        %v990 = vunpack.c.h.b16 %v756
        %v991 = vunpack.c.l.b16 %v757
        %v992 = vunpack.c.h.b16 %v757
        %v993 = vunpack.c.l.b16 %v758
        %v994 = vunpack.c.h.b16 %v758
        %v995 = vunpack.c.l.b16 %v759
        %v996 = vunpack.c.h.b16 %v759
        %v997 = vunpack.c.l.b16 %v760
        %v998 = vunpack.c.h.b16 %v760
        %v999 = vunpack.c.l.b16 %v761
        %v1000 = vunpack.c.h.b16 %v761
        %v1001 = vunpack.c.l.b16 %v762
        %v1002 = vunpack.c.h.b16 %v762
        %v1003 = vunpack.c.l.b16 %v763
        %v1004 = vunpack.c.h.b16 %v763
        %v1005 = vunpack.c.l.b16 %v764
        %v1006 = vunpack.c.h.b16 %v764
        %v1007 = vunpack.c.l.b16 %v765
        %v1008 = vunpack.c.h.b16 %v765
        %v1009 = vunpack.c.l.b16 %v766
        %v1010 = vunpack.c.h.b16 %v766
        %v1011 = vunpack.c.l.b16 %v767
        %v1012 = vunpack.c.h.b16 %v767
        %v1013 = vunpack.c.l.b16 %v768
        %v1014 = vunpack.c.h.b16 %v768
        %v1015 = vunpack.c.l.b16 %v769
        %v1016 = vunpack.c.h.b16 %v769
        %v1017 = vunpack.c.l.b16 %v770
        %v1018 = vunpack.c.h.b16 %v770
        %v1019 = vunpack.c.l.b16 %v771
        %v1020 = vunpack.c.h.b16 %v771
        %v1021 = vunpack.c.l.b16 %v772
        %v1022 = vunpack.c.h.b16 %v772
        %v1023 = vunpack.c.l.b16 %v773
        %v1024 = vunpack.c.h.b16 %v773
        %v1025 = vunpack.c.l.b16 %v774
        %v1026 = vunpack.c.h.b16 %v774
        %v1027 = vunpack.c.l.b16 %v775
        %v1028 = vunpack.c.h.b16 %v775
        %v1029 = vunpack.c.l.b16 %v776
        %v1030 = vunpack.c.h.b16 %v776
        %v1031 = vunpack.c.l.b16 %v777
        %v1032 = vunpack.c.h.b16 %v777
        %v1033 = vunpack.c.l.b16 %v778
        %v1034 = vunpack.c.h.b16 %v778
        %v1035 = vunpack.c.l.b16 %v779
        %v1036 = vunpack.c.h.b16 %v779
        %v1037 = vunpack.c.l.b16 %v780
        %v1038 = vunpack.c.h.b16 %v780
        %v1039 = vunpack.c.l.b16 %v781
        %v1040 = vunpack.c.h.b16 %v781
        %v1041 = vunpack.c.l.b16 %v782
        %v1042 = vunpack.c.h.b16 %v782
        %v1043 = vunpack.c.l.b16 %v783
        %v1044 = vunpack.c.h.b16 %v783
        %v1045 = vunpack.c.l.b16 %v784
        %v1046 = vunpack.c.h.b16 %v784
        %v1047 = vunpack.c.l.b16 %v785
        %v1048 = vunpack.c.h.b16 %v785
        %v1049 = vunpack.c.l.b16 %v786
        %v1050 = vunpack.c.h.b16 %v786
        %v1051 = vunpack.c.l.b16 %v787
        %v1052 = vunpack.c.h.b16 %v787
        %v1053 = vunpack.c.l.b16 %v788
        %v1054 = vunpack.c.h.b16 %v788
        %v1055 = vunpack.c.l.b16 %v789
        %v1056 = vunpack.c.h.b16 %v789
        %v1057 = vunpack.c.l.b16 %v790
        %v1058 = vunpack.c.h.b16 %v790
        %v1059 = vunpack.c.l.b16 %v791
        %v1060 = vunpack.c.h.b16 %v791
        %v1061 = vunpack.c.l.b16 %v792
        %v1062 = vunpack.c.h.b16 %v792
        %v1063 = vunpack.c.l.b16 %v793
        %v1064 = vunpack.c.h.b16 %v793
        %v1065 = vunpack.c.l.b16 %v794
        %v1066 = vunpack.c.h.b16 %v794
        %v1067 = vunpack.c.l.b16 %v795
        %v1068 = vunpack.c.h.b16 %v795
        %v1069 = vunpack.c.l.b16 %v796
        %v1070 = vunpack.c.h.b16 %v796
        %v1071 = vunpack.c.l.b16 %v797
        %v1072 = vunpack.c.h.b16 %v797
        %v1073 = vunpack.c.l.b16 %v798
        %v1074 = vunpack.c.h.b16 %v798
        %v1075 = vunpack.c.l.b16 %v799
        %v1076 = vunpack.c.h.b16 %v799
        %v1077 = vunpack.c.l.b16 %v800
        %v1078 = vunpack.c.h.b16 %v800
        %v1079 = vunpack.c.l.b16 %v801
        %v1080 = vunpack.c.h.b16 %v801
        %v1081 = vunpack.c.l.b16 %v802
        %v1082 = vunpack.c.h.b16 %v802
        %v1083 = vunpack.c.l.b16 %v803
        %v1084 = vunpack.c.h.b16 %v803
        %v1085 = vunpack.c.l.b16 %v804
        %v1086 = vunpack.c.h.b16 %v804
        %v1087 = vunpack.c.l.b16 %v805
        %v1088 = vunpack.c.h.b16 %v805
        %v1089 = vunpack.c.l.b16 %v806
        %v1090 = vunpack.c.h.b16 %v806
        %v1091 = vunpack.c.l.b16 %v807
        %v1092 = vunpack.c.h.b16 %v807
        %v1093 = vunpack.c.l.b16 %v808
        %v1094 = vunpack.c.h.b16 %v808
        %v1095 = vunpack.c.l.b16 %v809
        %v1096 = vunpack.c.h.b16 %v809
        %v1097 = vunpack.c.l.b16 %v810
        %v1098 = vunpack.c.h.b16 %v810
        %v1099 = vunpack.c.l.b16 %v811
        %v1100 = vunpack.c.h.b16 %v811
        %v1101 = vunpack.c.l.b16 %v812
        %v1102 = vunpack.c.h.b16 %v812
        %v1103 = vunpack.c.l.b16 %v813
        %v1104 = vunpack.c.h.b16 %v813
        %v1105 = vunpack.c.l.b16 %v814
        %v1106 = vunpack.c.h.b16 %v814
        %v1107 = vunpack.c.l.b16 %v815
        %v1108 = vunpack.c.h.b16 %v815
        %v1109 = vunpack.c.l.b16 %v816
        %v1110 = vunpack.c.h.b16 %v816
        %v1111 = vunpack.c.l.b16 %v817
        %v1112 = vunpack.c.h.b16 %v817
        %v1113 = vunpack.c.l.b16 %v818
        %v1114 = vunpack.c.h.b16 %v818
        %v1115 = vunpack.c.l.b16 %v819
        %v1116 = vunpack.c.h.b16 %v819
        %v1117 = vunpack.c.l.b16 %v820
        %v1118 = vunpack.c.h.b16 %v820
        %v1119 = vunpack.c.l.b16 %v821
        %v1120 = vunpack.c.h.b16 %v821
        %v1121 = vunpack.c.l.b16 %v822
        %v1122 = vunpack.c.h.b16 %v822
        %v1123 = vunpack.c.l.b16 %v823
        %v1124 = vunpack.c.h.b16 %v823
        %v1125 = vunpack.c.l.b16 %v824
        %v1126 = vunpack.c.h.b16 %v824
        %v1127 = vunpack.c.l.b16 %v825
        %v1128 = vunpack.c.h.b16 %v825
        %v1129 = vunpack.c.l.b16 %v826
        %v1130 = vunpack.c.h.b16 %v826
        %v1131 = vunpack.c.l.b16 %v827
        %v1132 = vunpack.c.h.b16 %v827
        %v1133 = vunpack.c.l.b16 %v828
        %v1134 = vunpack.c.h.b16 %v828
        %v1135 = vunpack.c.l.b16 %v829
        %v1136 = vunpack.c.h.b16 %v829
        %v1137 = vunpack.c.l.b16 %v830
        %v1138 = vunpack.c.h.b16 %v830
        %v1139 = vunpack.c.l.b16 %v831
        %v1140 = vunpack.c.h.b16 %v831
        %v1141 = vunpack.c.l.b16 %v832
        %v1142 = vunpack.c.h.b16 %v832
        %v1143 = vunpack.c.l.b16 %v833
        %v1144 = vunpack.c.h.b16 %v833
        %v1145 = vunpack.c.l.b16 %v834
        %v1146 = vunpack.c.h.b16 %v834
        %v1147 = vunpack.c.l.b16 %v835
        %v1148 = vunpack.c.h.b16 %v835
        %v1149 = vunpack.c.l.b16 %v836
        %v1150 = vunpack.c.h.b16 %v836
        %v1151 = vunpack.c.l.b16 %v837
        %v1152 = vunpack.c.h.b16 %v837
        %v1153 = vunpack.c.l.b16 %v838
        %v1154 = vunpack.c.h.b16 %v838
        %v1155 = vunpack.c.l.b16 %v839
        %v1156 = vunpack.c.h.b16 %v839
        %v1157 = vunpack.c.l.b16 %v840
        %v1158 = vunpack.c.h.b16 %v840
        %v1159 = vunpack.c.l.b16 %v841
        %v1160 = vunpack.c.h.b16 %v841
        %v1161 = vunpack.c.l.b16 %v842
        %v1162 = vunpack.c.h.b16 %v842
        %v1163 = vpack.c.b16 %v977, %v971
        %v1164 = vpack.c.b16 %v978, %v972
        %v1165 = vpack.c.b16 %v979, %v973
        %v1166 = vpack.c.b16 %v980, %v974
        %v1167 = vpack.c.b16 %v981, %v975
        %v1168 = vpack.c.b16 %v982, %v976
        %v1169 = vpack.c.b16 %v989, %v983
        %v1170 = vpack.c.b16 %v990, %v984
        %v1171 = vpack.c.b16 %v991, %v985
        %v1172 = vpack.c.b16 %v992, %v986
        %v1173 = vpack.c.b16 %v993, %v987
        %v1174 = vpack.c.b16 %v994, %v988
        %v1175 = vpack.c.b16 %v1001, %v995
        %v1176 = vpack.c.b16 %v1002, %v996
        %v1177 = vpack.c.b16 %v1003, %v997
        %v1178 = vpack.c.b16 %v1004, %v998
        %v1179 = vpack.c.b16 %v1005, %v999
        %v1180 = vpack.c.b16 %v1006, %v1000
        %v1181 = vpack.c.b16 %v1013, %v1007
        %v1182 = vpack.c.b16 %v1014, %v1008
        %v1183 = vpack.c.b16 %v1015, %v1009
        %v1184 = vpack.c.b16 %v1016, %v1010
        %v1185 = vpack.c.b16 %v1017, %v1011
        %v1186 = vpack.c.b16 %v1018, %v1012
        %v1187 = vpack.c.b16 %v1025, %v1019
        %v1188 = vpack.c.b16 %v1026, %v1020
        %v1189 = vpack.c.b16 %v1027, %v1021
        %v1190 = vpack.c.b16 %v1028, %v1022
        %v1191 = vpack.c.b16 %v1029, %v1023
        %v1192 = vpack.c.b16 %v1030, %v1024
        %v1193 = vpack.c.b16 %v1037, %v1031
        %v1194 = vpack.c.b16 %v1038, %v1032
        %v1195 = vpack.c.b16 %v1039, %v1033
        %v1196 = vpack.c.b16 %v1040, %v1034
        %v1197 = vpack.c.b16 %v1041, %v1035
        %v1198 = vpack.c.b16 %v1042, %v1036
        %v1199 = vpack.c.b16 %v1049, %v1043
        %v1200 = vpack.c.b16 %v1050, %v1044
        %v1201 = vpack.c.b16 %v1051, %v1045
        %v1202 = vpack.c.b16 %v1052, %v1046
        %v1203 = vpack.c.b16 %v1053, %v1047
        %v1204 = vpack.c.b16 %v1054, %v1048
        %v1205 = vpack.c.b16 %v1061, %v1055
        %v1206 = vpack.c.b16 %v1062, %v1056
        %v1207 = vpack.c.b16 %v1063, %v1057
        %v1208 = vpack.c.b16 %v1064, %v1058
        %v1209 = vpack.c.b16 %v1065, %v1059
        %v1210 = vpack.c.b16 %v1066, %v1060
        %v1211 = vpack.c.b16 %v1073, %v1067
        %v1212 = vpack.c.b16 %v1074, %v1068
        %v1213 = vpack.c.b16 %v1075, %v1069
        %v1214 = vpack.c.b16 %v1076, %v1070
        %v1215 = vpack.c.b16 %v1077, %v1071
        %v1216 = vpack.c.b16 %v1078, %v1072
        %v1217 = vpack.c.b16 %v1085, %v1079
        %v1218 = vpack.c.b16 %v1086, %v1080
        %v1219 = vpack.c.b16 %v1087, %v1081
        %v1220 = vpack.c.b16 %v1088, %v1082
        %v1221 = vpack.c.b16 %v1089, %v1083
        %v1222 = vpack.c.b16 %v1090, %v1084
        %v1223 = vpack.c.b16 %v1097, %v1091
        %v1224 = vpack.c.b16 %v1098, %v1092
        %v1225 = vpack.c.b16 %v1099, %v1093
        %v1226 = vpack.c.b16 %v1100, %v1094
        %v1227 = vpack.c.b16 %v1101, %v1095
        %v1228 = vpack.c.b16 %v1102, %v1096
        %v1229 = vpack.c.b16 %v1109, %v1103
        %v1230 = vpack.c.b16 %v1110, %v1104
        %v1231 = vpack.c.b16 %v1111, %v1105
        %v1232 = vpack.c.b16 %v1112, %v1106
        %v1233 = vpack.c.b16 %v1113, %v1107
        %v1234 = vpack.c.b16 %v1114, %v1108
        %v1235 = vpack.c.b16 %v1121, %v1115
        %v1236 = vpack.c.b16 %v1122, %v1116
        %v1237 = vpack.c.b16 %v1123, %v1117
        %v1238 = vpack.c.b16 %v1124, %v1118
        %v1239 = vpack.c.b16 %v1125, %v1119
        %v1240 = vpack.c.b16 %v1126, %v1120
        %v1241 = vpack.c.b16 %v1133, %v1127
        %v1242 = vpack.c.b16 %v1134, %v1128
        %v1243 = vpack.c.b16 %v1135, %v1129
        %v1244 = vpack.c.b16 %v1136, %v1130
        %v1245 = vpack.c.b16 %v1137, %v1131
        %v1246 = vpack.c.b16 %v1138, %v1132
        %v1247 = vpack.c.b16 %v1145, %v1139
        %v1248 = vpack.c.b16 %v1146, %v1140
        %v1249 = vpack.c.b16 %v1147, %v1141
        %v1250 = vpack.c.b16 %v1148, %v1142
        %v1251 = vpack.c.b16 %v1149, %v1143
        %v1252 = vpack.c.b16 %v1150, %v1144
        %v1253 = vpack.c.b16 %v1157, %v1151
        %v1254 = vpack.c.b16 %v1158, %v1152
        %v1255 = vpack.c.b16 %v1159, %v1153
        %v1256 = vpack.c.b16 %v1160, %v1154
        %v1257 = vpack.c.b16 %v1161, %v1155
        %v1258 = vpack.c.b16 %v1162, %v1156
        %1355 = vmatprep.subr.bf16.mxu0 %v1206
        %1356 = vmatpush1.bf16.msra.mxu0 %v1205
        %1357 = vmatprep.subr.bf16.mxu0 %v1200
        %1358 = vmatpush1.bf16.msra.mxu0 %v1199
        %1359 = vmatprep.subr.bf16.mxu0 %v1194
        %1360 = vmatpush1.bf16.msra.mxu0 %v1193
        %1361 = vmatprep.subr.bf16.mxu0 %v1188
        %1362 = vmatpush1.bf16.msra.mxu0 %v1187
        %1363 = vmatprep.subr.bf16.mxu0 %v1182
        %1364 = vmatpush1.bf16.msra.mxu0 %v1181
        %1365 = vmatprep.subr.bf16.mxu0 %v1176
        %1366 = vmatpush1.bf16.msra.mxu0 %v1175
        %1367 = vmatprep.subr.bf16.mxu0 %v1170
        %1368 = vmatpush1.bf16.msra.mxu0 %v1169
        %1369 = vmatprep.subr.bf16.mxu0 %v1164
        %1370 = vmatpush1.bf16.msra.mxu0 %v1163
        %1371 = vmatprep.subr.bf16.mxu0 %v1254
        %1372 = vmatpush2.bf16.msra.mxu0 %v1253
        %1373 = vmatprep.subr.bf16.mxu0 %v1248
        %1374 = vmatpush2.bf16.msra.mxu0 %v1247
        %1375 = vmatprep.subr.bf16.mxu0 %v1242
        %1376 = vmatpush2.bf16.msra.mxu0 %v1241
        %1377 = vmatprep.subr.bf16.mxu0 %v1236
        %1378 = vmatpush2.bf16.msra.mxu0 %v1235
        %1379 = vmatprep.subr.bf16.mxu0 %v1230
        %1380 = vmatpush2.bf16.msra.mxu0 %v1229
        %1381 = vmatprep.subr.bf16.mxu0 %v1224
        %1382 = vmatpush2.bf16.msra.mxu0 %v1223
        %1383 = vmatprep.subr.bf16.mxu0 %v1218
        %1384 = vmatpush2.bf16.msra.mxu0 %v1217
        %1385 = vmatprep.subr.bf16.mxu0 %v1212
        %1386 = vmatpush2.bf16.msra.mxu0 %v1211
        %1387 = vmatprep.mubr.bf16.mxu0 %v744
        %1388 = vmatmul.mubr.bf16.gmra.mxu0 %v743
        %v1389 = vpop.f32.mrf.mxu0
        %v1390 = vadd.f32 %v848, %v1389
        %v1391 = vpop.f32.mrf.mxu0
        %v1392 = vadd.f32 %v852, %v1391
        %v1393 = vpop.f32.mrf.mxu0
        %v1394 = vadd.f32 %v848, %v1393
        %v1395 = vpop.f32.mrf.mxu0
        %v1396 = vadd.f32 %v852, %v1395
        %1397 = vmatprep.mubr.bf16.mxu0 %v746
        %1398 = vmatmul.mubr.bf16.gmra.mxu0 %v745
        %v1399 = vpop.f32.mrf.mxu0
        %v1400 = vadd.f32 %v848, %v1399
        %v1401 = vpop.f32.mrf.mxu0
        %v1402 = vadd.f32 %v852, %v1401
        %v1403 = vpop.f32.mrf.mxu0
        %v1404 = vadd.f32 %v848, %v1403
        %v1405 = vpop.f32.mrf.mxu0
        %v1406 = vadd.f32 %v852, %v1405
        %1407 = vdwg.mxu0
        %1408 = vmatprep.subr.bf16.mxu0 %v1208
        %1409 = vmatpush1.bf16.msra.mxu0 %v1207
        %1410 = vmatprep.subr.bf16.mxu0 %v1202
        %1411 = vmatpush1.bf16.msra.mxu0 %v1201
        %1412 = vmatprep.subr.bf16.mxu0 %v1196
        %1413 = vmatpush1.bf16.msra.mxu0 %v1195
        %1414 = vmatprep.subr.bf16.mxu0 %v1190
        %1415 = vmatpush1.bf16.msra.mxu0 %v1189
        %1416 = vmatprep.subr.bf16.mxu0 %v1184
        %1417 = vmatpush1.bf16.msra.mxu0 %v1183
        %1418 = vmatprep.subr.bf16.mxu0 %v1178
        %1419 = vmatpush1.bf16.msra.mxu0 %v1177
        %1420 = vmatprep.subr.bf16.mxu0 %v1172
        %1421 = vmatpush1.bf16.msra.mxu0 %v1171
        %1422 = vmatprep.subr.bf16.mxu0 %v1166
        %1423 = vmatpush1.bf16.msra.mxu0 %v1165
        %1424 = vmatprep.subr.bf16.mxu0 %v1256
        %1425 = vmatpush2.bf16.msra.mxu0 %v1255
        %1426 = vmatprep.subr.bf16.mxu0 %v1250
        %1427 = vmatpush2.bf16.msra.mxu0 %v1249
        %1428 = vmatprep.subr.bf16.mxu0 %v1244
        %1429 = vmatpush2.bf16.msra.mxu0 %v1243
        %1430 = vmatprep.subr.bf16.mxu0 %v1238
        %1431 = vmatpush2.bf16.msra.mxu0 %v1237
        %1432 = vmatprep.subr.bf16.mxu0 %v1232
        %1433 = vmatpush2.bf16.msra.mxu0 %v1231
        %1434 = vmatprep.subr.bf16.mxu0 %v1226
        %1435 = vmatpush2.bf16.msra.mxu0 %v1225
        %1436 = vmatprep.subr.bf16.mxu0 %v1220
        %1437 = vmatpush2.bf16.msra.mxu0 %v1219
        %1438 = vmatprep.subr.bf16.mxu0 %v1214
        %1439 = vmatpush2.bf16.msra.mxu0 %v1213
        %1440 = vmatprep.mubr.bf16.mxu0 %v744
        %1441 = vmatmul.mubr.bf16.gmra.mxu0 %v743
        %v1442 = vpop.f32.mrf.mxu0
        %v1443 = vadd.f32 %v856, %v1442
        %v1444 = vpop.f32.mrf.mxu0
        %v1445 = vadd.f32 %v860, %v1444
        %v1446 = vpop.f32.mrf.mxu0
        %v1447 = vadd.f32 %v856, %v1446
        %v1448 = vpop.f32.mrf.mxu0
        %v1449 = vadd.f32 %v860, %v1448
        %1450 = vmatprep.mubr.bf16.mxu0 %v746
        %1451 = vmatmul.mubr.bf16.gmra.mxu0 %v745
        %v1452 = vpop.f32.mrf.mxu0
        %v1453 = vadd.f32 %v856, %v1452
        %v1454 = vpop.f32.mrf.mxu0
        %v1455 = vadd.f32 %v860, %v1454
        %v1456 = vpop.f32.mrf.mxu0
        %v1457 = vadd.f32 %v856, %v1456
        %v1458 = vpop.f32.mrf.mxu0
        %v1459 = vadd.f32 %v860, %v1458
        %1460 = vdwg.mxu0
        %1461 = vmatprep.subr.bf16.mxu0 %v1210
        %1462 = vmatpush1.bf16.msra.mxu0 %v1209
        %1463 = vmatprep.subr.bf16.mxu0 %v1204
        %1464 = vmatpush1.bf16.msra.mxu0 %v1203
        %1465 = vmatprep.subr.bf16.mxu0 %v1198
        %1466 = vmatpush1.bf16.msra.mxu0 %v1197
        %1467 = vmatprep.subr.bf16.mxu0 %v1192
        %1468 = vmatpush1.bf16.msra.mxu0 %v1191
        %1469 = vmatprep.subr.bf16.mxu0 %v1186
        %1470 = vmatpush1.bf16.msra.mxu0 %v1185
        %1471 = vmatprep.subr.bf16.mxu0 %v1180
        %1472 = vmatpush1.bf16.msra.mxu0 %v1179
        %1473 = vmatprep.subr.bf16.mxu0 %v1174
        %1474 = vmatpush1.bf16.msra.mxu0 %v1173
        %1475 = vmatprep.subr.bf16.mxu0 %v1168
        %1476 = vmatpush1.bf16.msra.mxu0 %v1167
        %1477 = vmatprep.subr.bf16.mxu0 %v1258
        %1478 = vmatpush2.bf16.msra.mxu0 %v1257
        %1479 = vmatprep.subr.bf16.mxu0 %v1252
        %1480 = vmatpush2.bf16.msra.mxu0 %v1251
        %1481 = vmatprep.subr.bf16.mxu0 %v1246
        %1482 = vmatpush2.bf16.msra.mxu0 %v1245
        %1483 = vmatprep.subr.bf16.mxu0 %v1240
        %1484 = vmatpush2.bf16.msra.mxu0 %v1239
        %1485 = vmatprep.subr.bf16.mxu0 %v1234
        %1486 = vmatpush2.bf16.msra.mxu0 %v1233
        %1487 = vmatprep.subr.bf16.mxu0 %v1228
        %1488 = vmatpush2.bf16.msra.mxu0 %v1227
        %1489 = vmatprep.subr.bf16.mxu0 %v1222
        %1490 = vmatpush2.bf16.msra.mxu0 %v1221
        %1491 = vmatprep.subr.bf16.mxu0 %v1216
        %1492 = vmatpush2.bf16.msra.mxu0 %v1215
        %1493 = vmatprep.mubr.bf16.mxu0 %v744
        %1494 = vmatmul.mubr.bf16.gmra.mxu0 %v743
        %v1495 = vpop.f32.mrf.mxu0
        %v1496 = vadd.f32 %v864, %v1495
        %v1497 = vpop.f32.mrf.mxu0
        %v1498 = vadd.f32 %v868, %v1497
        %v1499 = vpop.f32.mrf.mxu0
        %v1500 = vadd.f32 %v864, %v1499
        %v1501 = vpop.f32.mrf.mxu0
        %v1502 = vadd.f32 %v868, %v1501
        %1503 = vmatprep.mubr.bf16.mxu0 %v746
        %1504 = vmatmul.mubr.bf16.gmra.mxu0 %v745
        %v1505 = vpop.f32.mrf.mxu0
        %v1506 = vadd.f32 %v864, %v1505
        %v1507 = vpop.f32.mrf.mxu0
        %v1508 = vadd.f32 %v868, %v1507
        %v1509 = vpop.f32.mrf.mxu0
        %v1510 = vadd.f32 %v864, %v1509
        %v1511 = vpop.f32.mrf.mxu0
        %v1512 = vadd.f32 %v868, %v1511
        %1513 = vdwg.mxu0
        %1514 = vst [vmem:[#allocation3] sm:$0xff] %v1390
        %1515 = vst [vmem:[#allocation3 + $0x8] sm:$0xff] %v1392
        %1516 = vst [vmem:[#allocation3 + $0x10] sm:$0xff] %v1443
        %1517 = vst [vmem:[#allocation3 + $0x18] sm:$0xff] %v1445
        %1518 = vst [vmem:[#allocation3 + $0x20] sm:$0xff] %v1496
        %1519 = vst [vmem:[#allocation3 + $0x28] sm:$0xff] %v1498
        %1520 = vst [vmem:[#allocation3 + $0x30] sm:$0xff] %v1394
        %1521 = vst [vmem:[#allocation3 + $0x38] sm:$0xff] %v1396
        %1522 = vst [vmem:[#allocation3 + $0x40] sm:$0xff] %v1447
        %1523 = vst [vmem:[#allocation3 + $0x48] sm:$0xff] %v1449
        %1524 = vst [vmem:[#allocation3 + $0x50] sm:$0xff] %v1500
        %1525 = vst [vmem:[#allocation3 + $0x58] sm:$0xff] %v1502
        %1526 = vst [vmem:[#allocation3 + $0x60] sm:$0xff] %v1400
        %1527 = vst [vmem:[#allocation3 + $0x68] sm:$0xff] %v1402
        %1528 = vst [vmem:[#allocation3 + $0x70] sm:$0xff] %v1453
        %1529 = vst [vmem:[#allocation3 + $0x78] sm:$0xff] %v1455
        %1530 = vst [vmem:[#allocation3 + $0x80] sm:$0xff] %v1506
        %1531 = vst [vmem:[#allocation3 + $0x88] sm:$0xff] %v1508
        %1532 = vst [vmem:[#allocation3 + $0x90] sm:$0xff] %v1404
        %1533 = vst [vmem:[#allocation3 + $0x98] sm:$0xff] %v1406
        %1534 = vst [vmem:[#allocation3 + $0xa0] sm:$0xff] %v1457
        %1535 = vst [vmem:[#allocation3 + $0xa8] sm:$0xff] %v1459
        %1536 = vst [vmem:[#allocation3 + $0xb0] sm:$0xff] %v1510
        %1537 = vst [vmem:[#allocation3 + $0xb8] sm:$0xff] %v1512
        %v1538 = vld [vmem:[%s7] sm:$0x3]
        %v1540 = vlaneseq
        %v1541 = vshrl.u32 %v1540, 7
        %v1542 = vsub.s32 0, %v1541
        %v1543 = vrot.slane %v1538, %v1542
        %v1544 = vlaneseq
        %v1545 = vshrl.u32 %v1544, 7
        %v1546 = vsub.s32 1, %v1545
        %v1547 = vrot.slane %v1538, %v1546
        %v1550 = vld [vmem:[#allocation2] sm:$0xff]
        %v1551 = vld [vmem:[#allocation2 + $0x8] sm:$0xff]
        %v1552 = vld [vmem:[#allocation2 + $0x10] sm:$0xff]
        %v1553 = vld [vmem:[#allocation2 + $0x18] sm:$0xff]
        %v1554 = vld [vmem:[#allocation2 + $0x20] sm:$0xff]
        %v1555 = vld [vmem:[#allocation2 + $0x28] sm:$0xff]
        %v1556 = vld [vmem:[#allocation2 + $0x30] sm:$0xff]
        %v1557 = vld [vmem:[#allocation2 + $0x38] sm:$0xff]
        %v1558 = vpack.c.bf16 %v1552, %v1550
        %v1559 = vpack.c.bf16 %v1553, %v1551
        %v1560 = vpack.c.bf16 %v1556, %v1554
        %v1561 = vpack.c.bf16 %v1557, %v1555
        %v1562 = vld [vmem:[#allocation13] sm:$0xff]
        %v1563 = vld [vmem:[#allocation13 + $0x8] sm:$0xff]
        %v1564 = vld [vmem:[#allocation13 + $0x10] sm:$0xff]
        %v1565 = vld [vmem:[#allocation13 + $0x18] sm:$0xff]
        %v1566 = vld [vmem:[#allocation13 + $0x20] sm:$0xff]
        %v1567 = vld [vmem:[#allocation13 + $0x28] sm:$0xff]
        %v1568 = vld [vmem:[#allocation13 + $0x30] sm:$0xff]
        %v1569 = vld [vmem:[#allocation13 + $0x38] sm:$0xff]
        %v1570 = vld [vmem:[#allocation13 + $0x40] sm:$0xff]
        %v1571 = vld [vmem:[#allocation13 + $0x48] sm:$0xff]
        %v1572 = vld [vmem:[#allocation13 + $0x50] sm:$0xff]
        %v1573 = vld [vmem:[#allocation13 + $0x58] sm:$0xff]
        %v1574 = vld [vmem:[#allocation13 + $0x60] sm:$0xff]
        %v1575 = vld [vmem:[#allocation13 + $0x68] sm:$0xff]
        %v1576 = vld [vmem:[#allocation13 + $0x70] sm:$0xff]
        %v1577 = vld [vmem:[#allocation13 + $0x78] sm:$0xff]
        %v1578 = vld [vmem:[#allocation13 + $0x80] sm:$0xff]
        %v1579 = vld [vmem:[#allocation13 + $0x88] sm:$0xff]
        %v1580 = vld [vmem:[#allocation13 + $0x90] sm:$0xff]
        %v1581 = vld [vmem:[#allocation13 + $0x98] sm:$0xff]
        %v1582 = vld [vmem:[#allocation13 + $0xa0] sm:$0xff]
        %v1583 = vld [vmem:[#allocation13 + $0xa8] sm:$0xff]
        %v1584 = vld [vmem:[#allocation13 + $0xb0] sm:$0xff]
        %v1585 = vld [vmem:[#allocation13 + $0xb8] sm:$0xff]
        %v1586 = vld [vmem:[#allocation13 + $0xc0] sm:$0xff]
        %v1587 = vld [vmem:[#allocation13 + $0xc8] sm:$0xff]
        %v1588 = vld [vmem:[#allocation13 + $0xd0] sm:$0xff]
        %v1589 = vld [vmem:[#allocation13 + $0xd8] sm:$0xff]
        %v1590 = vld [vmem:[#allocation13 + $0xe0] sm:$0xff]
        %v1591 = vld [vmem:[#allocation13 + $0xe8] sm:$0xff]
        %v1592 = vld [vmem:[#allocation13 + $0xf0] sm:$0xff]
        %v1593 = vld [vmem:[#allocation13 + $0xf8] sm:$0xff]
        %v1594 = vld [vmem:[#allocation13 + $0x100] sm:$0xff]
        %v1595 = vld [vmem:[#allocation13 + $0x108] sm:$0xff]
        %v1596 = vld [vmem:[#allocation13 + $0x110] sm:$0xff]
        %v1597 = vld [vmem:[#allocation13 + $0x118] sm:$0xff]
        %v1598 = vld [vmem:[#allocation13 + $0x120] sm:$0xff]
        %v1599 = vld [vmem:[#allocation13 + $0x128] sm:$0xff]
        %v1600 = vld [vmem:[#allocation13 + $0x130] sm:$0xff]
        %v1601 = vld [vmem:[#allocation13 + $0x138] sm:$0xff]
        %v1602 = vld [vmem:[#allocation13 + $0x140] sm:$0xff]
        %v1603 = vld [vmem:[#allocation13 + $0x148] sm:$0xff]
        %v1604 = vld [vmem:[#allocation13 + $0x150] sm:$0xff]
        %v1605 = vld [vmem:[#allocation13 + $0x158] sm:$0xff]
        %v1606 = vld [vmem:[#allocation13 + $0x160] sm:$0xff]
        %v1607 = vld [vmem:[#allocation13 + $0x168] sm:$0xff]
        %v1608 = vld [vmem:[#allocation13 + $0x170] sm:$0xff]
        %v1609 = vld [vmem:[#allocation13 + $0x178] sm:$0xff]
        %v1610 = vld [vmem:[#allocation13 + $0x180] sm:$0xff]
        %v1611 = vld [vmem:[#allocation13 + $0x188] sm:$0xff]
        %v1612 = vld [vmem:[#allocation13 + $0x190] sm:$0xff]
        %v1613 = vld [vmem:[#allocation13 + $0x198] sm:$0xff]
        %v1614 = vld [vmem:[#allocation13 + $0x1a0] sm:$0xff]
        %v1615 = vld [vmem:[#allocation13 + $0x1a8] sm:$0xff]
        %v1616 = vld [vmem:[#allocation13 + $0x1b0] sm:$0xff]
        %v1617 = vld [vmem:[#allocation13 + $0x1b8] sm:$0xff]
        %v1618 = vld [vmem:[#allocation13 + $0x1c0] sm:$0xff]
        %v1619 = vld [vmem:[#allocation13 + $0x1c8] sm:$0xff]
        %v1620 = vld [vmem:[#allocation13 + $0x1d0] sm:$0xff]
        %v1621 = vld [vmem:[#allocation13 + $0x1d8] sm:$0xff]
        %v1622 = vld [vmem:[#allocation13 + $0x1e0] sm:$0xff]
        %v1623 = vld [vmem:[#allocation13 + $0x1e8] sm:$0xff]
        %v1624 = vld [vmem:[#allocation13 + $0x1f0] sm:$0xff]
        %v1625 = vld [vmem:[#allocation13 + $0x1f8] sm:$0xff]
        %v1626 = vld [vmem:[#allocation13 + $0x200] sm:$0xff]
        %v1627 = vld [vmem:[#allocation13 + $0x208] sm:$0xff]
        %v1628 = vld [vmem:[#allocation13 + $0x210] sm:$0xff]
        %v1629 = vld [vmem:[#allocation13 + $0x218] sm:$0xff]
        %v1630 = vld [vmem:[#allocation13 + $0x220] sm:$0xff]
        %v1631 = vld [vmem:[#allocation13 + $0x228] sm:$0xff]
        %v1632 = vld [vmem:[#allocation13 + $0x230] sm:$0xff]
        %v1633 = vld [vmem:[#allocation13 + $0x238] sm:$0xff]
        %v1634 = vld [vmem:[#allocation13 + $0x240] sm:$0xff]
        %v1635 = vld [vmem:[#allocation13 + $0x248] sm:$0xff]
        %v1636 = vld [vmem:[#allocation13 + $0x250] sm:$0xff]
        %v1637 = vld [vmem:[#allocation13 + $0x258] sm:$0xff]
        %v1638 = vld [vmem:[#allocation13 + $0x260] sm:$0xff]
        %v1639 = vld [vmem:[#allocation13 + $0x268] sm:$0xff]
        %v1640 = vld [vmem:[#allocation13 + $0x270] sm:$0xff]
        %v1641 = vld [vmem:[#allocation13 + $0x278] sm:$0xff]
        %v1642 = vld [vmem:[#allocation13 + $0x280] sm:$0xff]
        %v1643 = vld [vmem:[#allocation13 + $0x288] sm:$0xff]
        %v1644 = vld [vmem:[#allocation13 + $0x290] sm:$0xff]
        %v1645 = vld [vmem:[#allocation13 + $0x298] sm:$0xff]
        %v1646 = vld [vmem:[#allocation13 + $0x2a0] sm:$0xff]
        %v1647 = vld [vmem:[#allocation13 + $0x2a8] sm:$0xff]
        %v1648 = vld [vmem:[#allocation13 + $0x2b0] sm:$0xff]
        %v1649 = vld [vmem:[#allocation13 + $0x2b8] sm:$0xff]
        %v1650 = vld [vmem:[#allocation13 + $0x2c0] sm:$0xff]
        %v1651 = vld [vmem:[#allocation13 + $0x2c8] sm:$0xff]
        %v1652 = vld [vmem:[#allocation13 + $0x2d0] sm:$0xff]
        %v1653 = vld [vmem:[#allocation13 + $0x2d8] sm:$0xff]
        %v1654 = vld [vmem:[#allocation13 + $0x2e0] sm:$0xff]
        %v1655 = vld [vmem:[#allocation13 + $0x2e8] sm:$0xff]
        %v1656 = vld [vmem:[#allocation13 + $0x2f0] sm:$0xff]
        %v1657 = vld [vmem:[#allocation13 + $0x2f8] sm:$0xff]
        %v1754 = vunpack.c.l.b16 %v1562
        %v1755 = vunpack.c.h.b16 %v1562
        %v1756 = vunpack.c.l.b16 %v1563
        %v1757 = vunpack.c.h.b16 %v1563
        %v1758 = vunpack.c.l.b16 %v1564
        %v1759 = vunpack.c.h.b16 %v1564
        %v1760 = vunpack.c.l.b16 %v1565
        %v1761 = vunpack.c.h.b16 %v1565
        %v1762 = vunpack.c.l.b16 %v1566
        %v1763 = vunpack.c.h.b16 %v1566
        %v1764 = vunpack.c.l.b16 %v1567
        %v1765 = vunpack.c.h.b16 %v1567
        %v1766 = vunpack.c.l.b16 %v1568
        %v1767 = vunpack.c.h.b16 %v1568
        %v1768 = vunpack.c.l.b16 %v1569
        %v1769 = vunpack.c.h.b16 %v1569
        %v1770 = vunpack.c.l.b16 %v1570
        %v1771 = vunpack.c.h.b16 %v1570
        %v1772 = vunpack.c.l.b16 %v1571
        %v1773 = vunpack.c.h.b16 %v1571
        %v1774 = vunpack.c.l.b16 %v1572
        %v1775 = vunpack.c.h.b16 %v1572
        %v1776 = vunpack.c.l.b16 %v1573
        %v1777 = vunpack.c.h.b16 %v1573
        %v1778 = vunpack.c.l.b16 %v1574
        %v1779 = vunpack.c.h.b16 %v1574
        %v1780 = vunpack.c.l.b16 %v1575
        %v1781 = vunpack.c.h.b16 %v1575
        %v1782 = vunpack.c.l.b16 %v1576
        %v1783 = vunpack.c.h.b16 %v1576
        %v1784 = vunpack.c.l.b16 %v1577
        %v1785 = vunpack.c.h.b16 %v1577
        %v1786 = vunpack.c.l.b16 %v1578
        %v1787 = vunpack.c.h.b16 %v1578
        %v1788 = vunpack.c.l.b16 %v1579
        %v1789 = vunpack.c.h.b16 %v1579
        %v1790 = vunpack.c.l.b16 %v1580
        %v1791 = vunpack.c.h.b16 %v1580
        %v1792 = vunpack.c.l.b16 %v1581
        %v1793 = vunpack.c.h.b16 %v1581
        %v1794 = vunpack.c.l.b16 %v1582
        %v1795 = vunpack.c.h.b16 %v1582
        %v1796 = vunpack.c.l.b16 %v1583
        %v1797 = vunpack.c.h.b16 %v1583
        %v1798 = vunpack.c.l.b16 %v1584
        %v1799 = vunpack.c.h.b16 %v1584
        %v1800 = vunpack.c.l.b16 %v1585
        %v1801 = vunpack.c.h.b16 %v1585
        %v1802 = vunpack.c.l.b16 %v1586
        %v1803 = vunpack.c.h.b16 %v1586
        %v1804 = vunpack.c.l.b16 %v1587
        %v1805 = vunpack.c.h.b16 %v1587
        %v1806 = vunpack.c.l.b16 %v1588
        %v1807 = vunpack.c.h.b16 %v1588
        %v1808 = vunpack.c.l.b16 %v1589
        %v1809 = vunpack.c.h.b16 %v1589
        %v1810 = vunpack.c.l.b16 %v1590
        %v1811 = vunpack.c.h.b16 %v1590
        %v1812 = vunpack.c.l.b16 %v1591
        %v1813 = vunpack.c.h.b16 %v1591
        %v1814 = vunpack.c.l.b16 %v1592
        %v1815 = vunpack.c.h.b16 %v1592
        %v1816 = vunpack.c.l.b16 %v1593
        %v1817 = vunpack.c.h.b16 %v1593
        %v1818 = vunpack.c.l.b16 %v1594
        %v1819 = vunpack.c.h.b16 %v1594
        %v1820 = vunpack.c.l.b16 %v1595
        %v1821 = vunpack.c.h.b16 %v1595
        %v1822 = vunpack.c.l.b16 %v1596
        %v1823 = vunpack.c.h.b16 %v1596
        %v1824 = vunpack.c.l.b16 %v1597
        %v1825 = vunpack.c.h.b16 %v1597
        %v1826 = vunpack.c.l.b16 %v1598
        %v1827 = vunpack.c.h.b16 %v1598
        %v1828 = vunpack.c.l.b16 %v1599
        %v1829 = vunpack.c.h.b16 %v1599
        %v1830 = vunpack.c.l.b16 %v1600
        %v1831 = vunpack.c.h.b16 %v1600
        %v1832 = vunpack.c.l.b16 %v1601
        %v1833 = vunpack.c.h.b16 %v1601
        %v1834 = vunpack.c.l.b16 %v1602
        %v1835 = vunpack.c.h.b16 %v1602
        %v1836 = vunpack.c.l.b16 %v1603
        %v1837 = vunpack.c.h.b16 %v1603
        %v1838 = vunpack.c.l.b16 %v1604
        %v1839 = vunpack.c.h.b16 %v1604
        %v1840 = vunpack.c.l.b16 %v1605
        %v1841 = vunpack.c.h.b16 %v1605
        %v1842 = vunpack.c.l.b16 %v1606
        %v1843 = vunpack.c.h.b16 %v1606
        %v1844 = vunpack.c.l.b16 %v1607
        %v1845 = vunpack.c.h.b16 %v1607
        %v1846 = vunpack.c.l.b16 %v1608
        %v1847 = vunpack.c.h.b16 %v1608
        %v1848 = vunpack.c.l.b16 %v1609
        %v1849 = vunpack.c.h.b16 %v1609
        %v1850 = vunpack.c.l.b16 %v1610
        %v1851 = vunpack.c.h.b16 %v1610
        %v1852 = vunpack.c.l.b16 %v1611
        %v1853 = vunpack.c.h.b16 %v1611
        %v1854 = vunpack.c.l.b16 %v1612
        %v1855 = vunpack.c.h.b16 %v1612
        %v1856 = vunpack.c.l.b16 %v1613
        %v1857 = vunpack.c.h.b16 %v1613
        %v1858 = vunpack.c.l.b16 %v1614
        %v1859 = vunpack.c.h.b16 %v1614
        %v1860 = vunpack.c.l.b16 %v1615
        %v1861 = vunpack.c.h.b16 %v1615
        %v1862 = vunpack.c.l.b16 %v1616
        %v1863 = vunpack.c.h.b16 %v1616
        %v1864 = vunpack.c.l.b16 %v1617
        %v1865 = vunpack.c.h.b16 %v1617
        %v1866 = vunpack.c.l.b16 %v1618
        %v1867 = vunpack.c.h.b16 %v1618
        %v1868 = vunpack.c.l.b16 %v1619
        %v1869 = vunpack.c.h.b16 %v1619
        %v1870 = vunpack.c.l.b16 %v1620
        %v1871 = vunpack.c.h.b16 %v1620
        %v1872 = vunpack.c.l.b16 %v1621
        %v1873 = vunpack.c.h.b16 %v1621
        %v1874 = vunpack.c.l.b16 %v1622
        %v1875 = vunpack.c.h.b16 %v1622
        %v1876 = vunpack.c.l.b16 %v1623
        %v1877 = vunpack.c.h.b16 %v1623
        %v1878 = vunpack.c.l.b16 %v1624
        %v1879 = vunpack.c.h.b16 %v1624
        %v1880 = vunpack.c.l.b16 %v1625
        %v1881 = vunpack.c.h.b16 %v1625
        %v1882 = vunpack.c.l.b16 %v1626
        %v1883 = vunpack.c.h.b16 %v1626
        %v1884 = vunpack.c.l.b16 %v1627
        %v1885 = vunpack.c.h.b16 %v1627
        %v1886 = vunpack.c.l.b16 %v1628
        %v1887 = vunpack.c.h.b16 %v1628
        %v1888 = vunpack.c.l.b16 %v1629
        %v1889 = vunpack.c.h.b16 %v1629
        %v1890 = vunpack.c.l.b16 %v1630
        %v1891 = vunpack.c.h.b16 %v1630
        %v1892 = vunpack.c.l.b16 %v1631
        %v1893 = vunpack.c.h.b16 %v1631
        %v1894 = vunpack.c.l.b16 %v1632
        %v1895 = vunpack.c.h.b16 %v1632
        %v1896 = vunpack.c.l.b16 %v1633
        %v1897 = vunpack.c.h.b16 %v1633
        %v1898 = vunpack.c.l.b16 %v1634
        %v1899 = vunpack.c.h.b16 %v1634
        %v1900 = vunpack.c.l.b16 %v1635
        %v1901 = vunpack.c.h.b16 %v1635
        %v1902 = vunpack.c.l.b16 %v1636
        %v1903 = vunpack.c.h.b16 %v1636
        %v1904 = vunpack.c.l.b16 %v1637
        %v1905 = vunpack.c.h.b16 %v1637
        %v1906 = vunpack.c.l.b16 %v1638
        %v1907 = vunpack.c.h.b16 %v1638
        %v1908 = vunpack.c.l.b16 %v1639
        %v1909 = vunpack.c.h.b16 %v1639
        %v1910 = vunpack.c.l.b16 %v1640
        %v1911 = vunpack.c.h.b16 %v1640
        %v1912 = vunpack.c.l.b16 %v1641
        %v1913 = vunpack.c.h.b16 %v1641
        %v1914 = vunpack.c.l.b16 %v1642
        %v1915 = vunpack.c.h.b16 %v1642
        %v1916 = vunpack.c.l.b16 %v1643
        %v1917 = vunpack.c.h.b16 %v1643
        %v1918 = vunpack.c.l.b16 %v1644
        %v1919 = vunpack.c.h.b16 %v1644
        %v1920 = vunpack.c.l.b16 %v1645
        %v1921 = vunpack.c.h.b16 %v1645
        %v1922 = vunpack.c.l.b16 %v1646
        %v1923 = vunpack.c.h.b16 %v1646
        %v1924 = vunpack.c.l.b16 %v1647
        %v1925 = vunpack.c.h.b16 %v1647
        %v1926 = vunpack.c.l.b16 %v1648
        %v1927 = vunpack.c.h.b16 %v1648
        %v1928 = vunpack.c.l.b16 %v1649
        %v1929 = vunpack.c.h.b16 %v1649
        %v1930 = vunpack.c.l.b16 %v1650
        %v1931 = vunpack.c.h.b16 %v1650
        %v1932 = vunpack.c.l.b16 %v1651
        %v1933 = vunpack.c.h.b16 %v1651
        %v1934 = vunpack.c.l.b16 %v1652
        %v1935 = vunpack.c.h.b16 %v1652
        %v1936 = vunpack.c.l.b16 %v1653
        %v1937 = vunpack.c.h.b16 %v1653
        %v1938 = vunpack.c.l.b16 %v1654
        %v1939 = vunpack.c.h.b16 %v1654
        %v1940 = vunpack.c.l.b16 %v1655
        %v1941 = vunpack.c.h.b16 %v1655
        %v1942 = vunpack.c.l.b16 %v1656
        %v1943 = vunpack.c.h.b16 %v1656
        %v1944 = vunpack.c.l.b16 %v1657
        %v1945 = vunpack.c.h.b16 %v1657
        %v1946 = vpack.c.b16 %v1760, %v1754
        %v1947 = vpack.c.b16 %v1761, %v1755
        %v1948 = vpack.c.b16 %v1762, %v1756
        %v1949 = vpack.c.b16 %v1763, %v1757
        %v1950 = vpack.c.b16 %v1764, %v1758
        %v1951 = vpack.c.b16 %v1765, %v1759
        %v1952 = vpack.c.b16 %v1772, %v1766
        %v1953 = vpack.c.b16 %v1773, %v1767
        %v1954 = vpack.c.b16 %v1774, %v1768
        %v1955 = vpack.c.b16 %v1775, %v1769
        %v1956 = vpack.c.b16 %v1776, %v1770
        %v1957 = vpack.c.b16 %v1777, %v1771
        %v1958 = vpack.c.b16 %v1784, %v1778
        %v1959 = vpack.c.b16 %v1785, %v1779
        %v1960 = vpack.c.b16 %v1786, %v1780
        %v1961 = vpack.c.b16 %v1787, %v1781
        %v1962 = vpack.c.b16 %v1788, %v1782
        %v1963 = vpack.c.b16 %v1789, %v1783
        %v1964 = vpack.c.b16 %v1796, %v1790
        %v1965 = vpack.c.b16 %v1797, %v1791
        %v1966 = vpack.c.b16 %v1798, %v1792
        %v1967 = vpack.c.b16 %v1799, %v1793
        %v1968 = vpack.c.b16 %v1800, %v1794
        %v1969 = vpack.c.b16 %v1801, %v1795
        %v1970 = vpack.c.b16 %v1808, %v1802
        %v1971 = vpack.c.b16 %v1809, %v1803
        %v1972 = vpack.c.b16 %v1810, %v1804
        %v1973 = vpack.c.b16 %v1811, %v1805
        %v1974 = vpack.c.b16 %v1812, %v1806
        %v1975 = vpack.c.b16 %v1813, %v1807
        %v1976 = vpack.c.b16 %v1820, %v1814
        %v1977 = vpack.c.b16 %v1821, %v1815
        %v1978 = vpack.c.b16 %v1822, %v1816
        %v1979 = vpack.c.b16 %v1823, %v1817
        %v1980 = vpack.c.b16 %v1824, %v1818
        %v1981 = vpack.c.b16 %v1825, %v1819
        %v1982 = vpack.c.b16 %v1832, %v1826
        %v1983 = vpack.c.b16 %v1833, %v1827
        %v1984 = vpack.c.b16 %v1834, %v1828
        %v1985 = vpack.c.b16 %v1835, %v1829
        %v1986 = vpack.c.b16 %v1836, %v1830
        %v1987 = vpack.c.b16 %v1837, %v1831
        %v1988 = vpack.c.b16 %v1844, %v1838
        %v1989 = vpack.c.b16 %v1845, %v1839
        %v1990 = vpack.c.b16 %v1846, %v1840
        %v1991 = vpack.c.b16 %v1847, %v1841
        %v1992 = vpack.c.b16 %v1848, %v1842
        %v1993 = vpack.c.b16 %v1849, %v1843
        %v1994 = vpack.c.b16 %v1856, %v1850
        %v1995 = vpack.c.b16 %v1857, %v1851
        %v1996 = vpack.c.b16 %v1858, %v1852
        %v1997 = vpack.c.b16 %v1859, %v1853
        %v1998 = vpack.c.b16 %v1860, %v1854
        %v1999 = vpack.c.b16 %v1861, %v1855
        %v2000 = vpack.c.b16 %v1868, %v1862
        %v2001 = vpack.c.b16 %v1869, %v1863
        %v2002 = vpack.c.b16 %v1870, %v1864
        %v2003 = vpack.c.b16 %v1871, %v1865
        %v2004 = vpack.c.b16 %v1872, %v1866
        %v2005 = vpack.c.b16 %v1873, %v1867
        %v2006 = vpack.c.b16 %v1880, %v1874
        %v2007 = vpack.c.b16 %v1881, %v1875
        %v2008 = vpack.c.b16 %v1882, %v1876
        %v2009 = vpack.c.b16 %v1883, %v1877
        %v2010 = vpack.c.b16 %v1884, %v1878
        %v2011 = vpack.c.b16 %v1885, %v1879
        %v2012 = vpack.c.b16 %v1892, %v1886
        %v2013 = vpack.c.b16 %v1893, %v1887
        %v2014 = vpack.c.b16 %v1894, %v1888
        %v2015 = vpack.c.b16 %v1895, %v1889
        %v2016 = vpack.c.b16 %v1896, %v1890
        %v2017 = vpack.c.b16 %v1897, %v1891
        %v2018 = vpack.c.b16 %v1904, %v1898
        %v2019 = vpack.c.b16 %v1905, %v1899
        %v2020 = vpack.c.b16 %v1906, %v1900
        %v2021 = vpack.c.b16 %v1907, %v1901
        %v2022 = vpack.c.b16 %v1908, %v1902
        %v2023 = vpack.c.b16 %v1909, %v1903
        %v2024 = vpack.c.b16 %v1916, %v1910
        %v2025 = vpack.c.b16 %v1917, %v1911
        %v2026 = vpack.c.b16 %v1918, %v1912
        %v2027 = vpack.c.b16 %v1919, %v1913
        %v2028 = vpack.c.b16 %v1920, %v1914
        %v2029 = vpack.c.b16 %v1921, %v1915
        %v2030 = vpack.c.b16 %v1928, %v1922
        %v2031 = vpack.c.b16 %v1929, %v1923
        %v2032 = vpack.c.b16 %v1930, %v1924
        %v2033 = vpack.c.b16 %v1931, %v1925
        %v2034 = vpack.c.b16 %v1932, %v1926
        %v2035 = vpack.c.b16 %v1933, %v1927
        %v2036 = vpack.c.b16 %v1940, %v1934
        %v2037 = vpack.c.b16 %v1941, %v1935
        %v2038 = vpack.c.b16 %v1942, %v1936
        %v2039 = vpack.c.b16 %v1943, %v1937
        %v2040 = vpack.c.b16 %v1944, %v1938
        %v2041 = vpack.c.b16 %v1945, %v1939
        %2138 = vmatprep.subr.bf16.mxu0 %v1989
        %2139 = vmatpush1.bf16.msra.mxu0 %v1988
        %2140 = vmatprep.subr.bf16.mxu0 %v1983
        %2141 = vmatpush1.bf16.msra.mxu0 %v1982
        %2142 = vmatprep.subr.bf16.mxu0 %v1977
        %2143 = vmatpush1.bf16.msra.mxu0 %v1976
        %2144 = vmatprep.subr.bf16.mxu0 %v1971
        %2145 = vmatpush1.bf16.msra.mxu0 %v1970
        %2146 = vmatprep.subr.bf16.mxu0 %v1965
        %2147 = vmatpush1.bf16.msra.mxu0 %v1964
        %2148 = vmatprep.subr.bf16.mxu0 %v1959
        %2149 = vmatpush1.bf16.msra.mxu0 %v1958
        %2150 = vmatprep.subr.bf16.mxu0 %v1953
        %2151 = vmatpush1.bf16.msra.mxu0 %v1952
        %2152 = vmatprep.subr.bf16.mxu0 %v1947
        %2153 = vmatpush1.bf16.msra.mxu0 %v1946
        %2154 = vmatprep.subr.bf16.mxu0 %v2037
        %2155 = vmatpush2.bf16.msra.mxu0 %v2036
        %2156 = vmatprep.subr.bf16.mxu0 %v2031
        %2157 = vmatpush2.bf16.msra.mxu0 %v2030
        %2158 = vmatprep.subr.bf16.mxu0 %v2025
        %2159 = vmatpush2.bf16.msra.mxu0 %v2024
        %2160 = vmatprep.subr.bf16.mxu0 %v2019
        %2161 = vmatpush2.bf16.msra.mxu0 %v2018
        %2162 = vmatprep.subr.bf16.mxu0 %v2013
        %2163 = vmatpush2.bf16.msra.mxu0 %v2012
        %2164 = vmatprep.subr.bf16.mxu0 %v2007
        %2165 = vmatpush2.bf16.msra.mxu0 %v2006
        %2166 = vmatprep.subr.bf16.mxu0 %v2001
        %2167 = vmatpush2.bf16.msra.mxu0 %v2000
        %2168 = vmatprep.subr.bf16.mxu0 %v1995
        %2169 = vmatpush2.bf16.msra.mxu0 %v1994
        %2170 = vmatprep.mubr.bf16.mxu0 %v1559
        %2171 = vmatmul.mubr.bf16.gmra.mxu0 %v1558
        %v2172 = vpop.f32.mrf.mxu0
        %v2173 = vadd.f32 0.0, %v2172
        %v2174 = vpop.f32.mrf.mxu0
        %v2175 = vadd.f32 0.0, %v2174
        %v2176 = vpop.f32.mrf.mxu0
        %v2177 = vadd.f32 0.0, %v2176
        %v2178 = vpop.f32.mrf.mxu0
        %v2179 = vadd.f32 0.0, %v2178
        %2180 = vmatprep.mubr.bf16.mxu0 %v1561
        %2181 = vmatmul.mubr.bf16.gmra.mxu0 %v1560
        %v2182 = vpop.f32.mrf.mxu0
        %v2183 = vadd.f32 0.0, %v2182
        %v2184 = vpop.f32.mrf.mxu0
        %v2185 = vadd.f32 0.0, %v2184
        %v2186 = vpop.f32.mrf.mxu0
        %v2187 = vadd.f32 0.0, %v2186
        %v2188 = vpop.f32.mrf.mxu0
        %v2189 = vadd.f32 0.0, %v2188
        %2190 = vdwg.mxu0
        %2191 = vmatprep.subr.bf16.mxu0 %v1991
        %2192 = vmatpush1.bf16.msra.mxu0 %v1990
        %2193 = vmatprep.subr.bf16.mxu0 %v1985
        %2194 = vmatpush1.bf16.msra.mxu0 %v1984
        %2195 = vmatprep.subr.bf16.mxu0 %v1979
        %2196 = vmatpush1.bf16.msra.mxu0 %v1978
        %2197 = vmatprep.subr.bf16.mxu0 %v1973
        %2198 = vmatpush1.bf16.msra.mxu0 %v1972
        %2199 = vmatprep.subr.bf16.mxu0 %v1967
        %2200 = vmatpush1.bf16.msra.mxu0 %v1966
        %2201 = vmatprep.subr.bf16.mxu0 %v1961
        %2202 = vmatpush1.bf16.msra.mxu0 %v1960
        %2203 = vmatprep.subr.bf16.mxu0 %v1955
        %2204 = vmatpush1.bf16.msra.mxu0 %v1954
        %2205 = vmatprep.subr.bf16.mxu0 %v1949
        %2206 = vmatpush1.bf16.msra.mxu0 %v1948
        %2207 = vmatprep.subr.bf16.mxu0 %v2039
        %2208 = vmatpush2.bf16.msra.mxu0 %v2038
        %2209 = vmatprep.subr.bf16.mxu0 %v2033
        %2210 = vmatpush2.bf16.msra.mxu0 %v2032
        %2211 = vmatprep.subr.bf16.mxu0 %v2027
        %2212 = vmatpush2.bf16.msra.mxu0 %v2026
        %2213 = vmatprep.subr.bf16.mxu0 %v2021
        %2214 = vmatpush2.bf16.msra.mxu0 %v2020
        %2215 = vmatprep.subr.bf16.mxu0 %v2015
        %2216 = vmatpush2.bf16.msra.mxu0 %v2014
        %2217 = vmatprep.subr.bf16.mxu0 %v2009
        %2218 = vmatpush2.bf16.msra.mxu0 %v2008
        %2219 = vmatprep.subr.bf16.mxu0 %v2003
        %2220 = vmatpush2.bf16.msra.mxu0 %v2002
        %2221 = vmatprep.subr.bf16.mxu0 %v1997
        %2222 = vmatpush2.bf16.msra.mxu0 %v1996
        %2223 = vmatprep.mubr.bf16.mxu0 %v1559
        %2224 = vmatmul.mubr.bf16.gmra.mxu0 %v1558
        %v2225 = vpop.f32.mrf.mxu0
        %v2226 = vadd.f32 0.0, %v2225
        %v2227 = vpop.f32.mrf.mxu0
        %v2228 = vadd.f32 0.0, %v2227
        %v2229 = vpop.f32.mrf.mxu0
        %v2230 = vadd.f32 0.0, %v2229
        %v2231 = vpop.f32.mrf.mxu0
        %v2232 = vadd.f32 0.0, %v2231
        %2233 = vmatprep.mubr.bf16.mxu0 %v1561
        %2234 = vmatmul.mubr.bf16.gmra.mxu0 %v1560
        %v2235 = vpop.f32.mrf.mxu0
        %v2236 = vadd.f32 0.0, %v2235
        %v2237 = vpop.f32.mrf.mxu0
        %v2238 = vadd.f32 0.0, %v2237
        %v2239 = vpop.f32.mrf.mxu0
        %v2240 = vadd.f32 0.0, %v2239
        %v2241 = vpop.f32.mrf.mxu0
        %v2242 = vadd.f32 0.0, %v2241
        %2243 = vdwg.mxu0
        %2244 = vmatprep.subr.bf16.mxu0 %v1993
        %2245 = vmatpush1.bf16.msra.mxu0 %v1992
        %2246 = vmatprep.subr.bf16.mxu0 %v1987
        %2247 = vmatpush1.bf16.msra.mxu0 %v1986
        %2248 = vmatprep.subr.bf16.mxu0 %v1981
        %2249 = vmatpush1.bf16.msra.mxu0 %v1980
        %2250 = vmatprep.subr.bf16.mxu0 %v1975
        %2251 = vmatpush1.bf16.msra.mxu0 %v1974
        %2252 = vmatprep.subr.bf16.mxu0 %v1969
        %2253 = vmatpush1.bf16.msra.mxu0 %v1968
        %2254 = vmatprep.subr.bf16.mxu0 %v1963
        %2255 = vmatpush1.bf16.msra.mxu0 %v1962
        %2256 = vmatprep.subr.bf16.mxu0 %v1957
        %2257 = vmatpush1.bf16.msra.mxu0 %v1956
        %2258 = vmatprep.subr.bf16.mxu0 %v1951
        %2259 = vmatpush1.bf16.msra.mxu0 %v1950
        %2260 = vmatprep.subr.bf16.mxu0 %v2041
        %2261 = vmatpush2.bf16.msra.mxu0 %v2040
        %2262 = vmatprep.subr.bf16.mxu0 %v2035
        %2263 = vmatpush2.bf16.msra.mxu0 %v2034
        %2264 = vmatprep.subr.bf16.mxu0 %v2029
        %2265 = vmatpush2.bf16.msra.mxu0 %v2028
        %2266 = vmatprep.subr.bf16.mxu0 %v2023
        %2267 = vmatpush2.bf16.msra.mxu0 %v2022
        %2268 = vmatprep.subr.bf16.mxu0 %v2017
        %2269 = vmatpush2.bf16.msra.mxu0 %v2016
        %2270 = vmatprep.subr.bf16.mxu0 %v2011
        %2271 = vmatpush2.bf16.msra.mxu0 %v2010
        %2272 = vmatprep.subr.bf16.mxu0 %v2005
        %2273 = vmatpush2.bf16.msra.mxu0 %v2004
        %2274 = vmatprep.subr.bf16.mxu0 %v1999
        %2275 = vmatpush2.bf16.msra.mxu0 %v1998
        %2276 = vmatprep.mubr.bf16.mxu0 %v1559
        %2277 = vmatmul.mubr.bf16.gmra.mxu0 %v1558
        %v2278 = vpop.f32.mrf.mxu0
        %v2279 = vadd.f32 0.0, %v2278
        %v2280 = vpop.f32.mrf.mxu0
        %v2281 = vadd.f32 0.0, %v2280
        %v2282 = vpop.f32.mrf.mxu0
        %v2283 = vadd.f32 0.0, %v2282
        %v2284 = vpop.f32.mrf.mxu0
        %v2285 = vadd.f32 0.0, %v2284
        %2286 = vmatprep.mubr.bf16.mxu0 %v1561
        %2287 = vmatmul.mubr.bf16.gmra.mxu0 %v1560
        %v2288 = vpop.f32.mrf.mxu0
        %v2289 = vadd.f32 0.0, %v2288
        %v2290 = vpop.f32.mrf.mxu0
        %v2291 = vadd.f32 0.0, %v2290
        %v2292 = vpop.f32.mrf.mxu0
        %v2293 = vadd.f32 0.0, %v2292
        %v2294 = vpop.f32.mrf.mxu0
        %v2295 = vadd.f32 0.0, %v2294
        %2296 = vdwg.mxu0
        %v2297 = vld [vmem:[#allocation3] sm:$0xff]
        %v2298 = vld [vmem:[#allocation3 + $0x8] sm:$0xff]
        %v2299 = vld [vmem:[#allocation3 + $0x10] sm:$0xff]
        %v2300 = vld [vmem:[#allocation3 + $0x18] sm:$0xff]
        %v2301 = vld [vmem:[#allocation3 + $0x20] sm:$0xff]
        %v2302 = vld [vmem:[#allocation3 + $0x28] sm:$0xff]
        %v2303 = vld [vmem:[#allocation3 + $0x30] sm:$0xff]
        %v2304 = vld [vmem:[#allocation3 + $0x38] sm:$0xff]
        %v2305 = vld [vmem:[#allocation3 + $0x40] sm:$0xff]
        %v2306 = vld [vmem:[#allocation3 + $0x48] sm:$0xff]
        %v2307 = vld [vmem:[#allocation3 + $0x50] sm:$0xff]
        %v2308 = vld [vmem:[#allocation3 + $0x58] sm:$0xff]
        %v2309 = vld [vmem:[#allocation3 + $0x60] sm:$0xff]
        %v2310 = vld [vmem:[#allocation3 + $0x68] sm:$0xff]
        %v2311 = vld [vmem:[#allocation3 + $0x70] sm:$0xff]
        %v2312 = vld [vmem:[#allocation3 + $0x78] sm:$0xff]
        %v2313 = vld [vmem:[#allocation3 + $0x80] sm:$0xff]
        %v2314 = vld [vmem:[#allocation3 + $0x88] sm:$0xff]
        %v2315 = vld [vmem:[#allocation3 + $0x90] sm:$0xff]
        %v2316 = vld [vmem:[#allocation3 + $0x98] sm:$0xff]
        %v2317 = vld [vmem:[#allocation3 + $0xa0] sm:$0xff]
        %v2318 = vld [vmem:[#allocation3 + $0xa8] sm:$0xff]
        %v2319 = vld [vmem:[#allocation3 + $0xb0] sm:$0xff]
        %v2320 = vld [vmem:[#allocation3 + $0xb8] sm:$0xff]
        %v2321 = vadd.f32 %v2297, %v2173
        %v2322 = vadd.f32 %v2298, %v2175
        %v2323 = vadd.f32 %v2299, %v2226
        %v2324 = vadd.f32 %v2300, %v2228
        %v2325 = vadd.f32 %v2303, %v2177
        %v2326 = vadd.f32 %v2304, %v2179
        %v2327 = vadd.f32 %v2305, %v2230
        %v2328 = vadd.f32 %v2306, %v2232
        %v2329 = vadd.f32 %v2309, %v2183
        %v2330 = vadd.f32 %v2310, %v2185
        %v2331 = vadd.f32 %v2311, %v2236
        %v2332 = vadd.f32 %v2312, %v2238
        %v2333 = vadd.f32 %v2315, %v2187
        %v2334 = vadd.f32 %v2316, %v2189
        %v2335 = vadd.f32 %v2317, %v2240
        %v2336 = vadd.f32 %v2318, %v2242
        %v2337 = vxor.u32 %v2321, 2147483648
        %v2338 = vxor.u32 %v2322, 2147483648
        %v2339 = vxor.u32 %v2323, 2147483648
        %v2340 = vxor.u32 %v2324, 2147483648
        %v2341 = vxor.u32 %v2325, 2147483648
        %v2342 = vxor.u32 %v2326, 2147483648
        %v2343 = vxor.u32 %v2327, 2147483648
        %v2344 = vxor.u32 %v2328, 2147483648
        %v2345 = vxor.u32 %v2329, 2147483648
        %v2346 = vxor.u32 %v2330, 2147483648
        %v2347 = vxor.u32 %v2331, 2147483648
        %v2348 = vxor.u32 %v2332, 2147483648
        %v2349 = vxor.u32 %v2333, 2147483648
        %v2350 = vxor.u32 %v2334, 2147483648
        %v2351 = vxor.u32 %v2335, 2147483648
        %v2352 = vxor.u32 %v2336, 2147483648
        %v2353 = vmul.f32 %v2337, 1.442695
        %v2354 = vpow.pop %v2353
        %v2355 = vmul.f32 %v2338, 1.442695
        %v2356 = vpow.pop %v2355
        %v2357 = vmul.f32 %v2339, 1.442695
        %v2358 = vpow.pop %v2357
        %v2359 = vmul.f32 %v2340, 1.442695
        %v2360 = vpow.pop %v2359
        %v2361 = vmul.f32 %v2341, 1.442695
        %v2362 = vpow.pop %v2361
        %v2363 = vmul.f32 %v2342, 1.442695
        %v2364 = vpow.pop %v2363
        %v2365 = vmul.f32 %v2343, 1.442695
        %v2366 = vpow.pop %v2365
        %v2367 = vmul.f32 %v2344, 1.442695
        %v2368 = vpow.pop %v2367
        %v2369 = vmul.f32 %v2345, 1.442695
        %v2370 = vpow.pop %v2369
        %v2371 = vmul.f32 %v2346, 1.442695
        %v2372 = vpow.pop %v2371
        %v2373 = vmul.f32 %v2347, 1.442695
        %v2374 = vpow.pop %v2373
        %v2375 = vmul.f32 %v2348, 1.442695
        %v2376 = vpow.pop %v2375
        %v2377 = vmul.f32 %v2349, 1.442695
        %v2378 = vpow.pop %v2377
        %v2379 = vmul.f32 %v2350, 1.442695
        %v2380 = vpow.pop %v2379
        %v2381 = vmul.f32 %v2351, 1.442695
        %v2382 = vpow.pop %v2381
        %v2383 = vmul.f32 %v2352, 1.442695
        %v2384 = vpow.pop %v2383
        %v2385 = vadd.f32 %v2354, 1.0
        %v2386 = vadd.f32 %v2356, 1.0
        %v2387 = vadd.f32 %v2358, 1.0
        %v2388 = vadd.f32 %v2360, 1.0
        %v2389 = vadd.f32 %v2362, 1.0
        %v2390 = vadd.f32 %v2364, 1.0
        %v2391 = vadd.f32 %v2366, 1.0
        %v2392 = vadd.f32 %v2368, 1.0
        %v2393 = vadd.f32 %v2370, 1.0
        %v2394 = vadd.f32 %v2372, 1.0
        %v2395 = vadd.f32 %v2374, 1.0
        %v2396 = vadd.f32 %v2376, 1.0
        %v2397 = vadd.f32 %v2378, 1.0
        %v2398 = vadd.f32 %v2380, 1.0
        %v2399 = vadd.f32 %v2382, 1.0
        %v2400 = vadd.f32 %v2384, 1.0
        %v2401 = vrcp.pop %v2385
        %v2402 = vmul.f32 1.0, %v2401
        %v2403 = vrcp.pop %v2386
        %v2404 = vmul.f32 1.0, %v2403
        %v2405 = vrcp.pop %v2387
        %v2406 = vmul.f32 1.0, %v2405
        %v2407 = vrcp.pop %v2388
        %v2408 = vmul.f32 1.0, %v2407
        %v2409 = vrcp.pop %v2389
        %v2410 = vmul.f32 1.0, %v2409
        %v2411 = vrcp.pop %v2390
        %v2412 = vmul.f32 1.0, %v2411
        %v2413 = vrcp.pop %v2391
        %v2414 = vmul.f32 1.0, %v2413
        %v2415 = vrcp.pop %v2392
        %v2416 = vmul.f32 1.0, %v2415
        %v2417 = vrcp.pop %v2393
        %v2418 = vmul.f32 1.0, %v2417
        %v2419 = vrcp.pop %v2394
        %v2420 = vmul.f32 1.0, %v2419
        %v2421 = vrcp.pop %v2395
        %v2422 = vmul.f32 1.0, %v2421
        %v2423 = vrcp.pop %v2396
        %v2424 = vmul.f32 1.0, %v2423
        %v2425 = vrcp.pop %v2397
        %v2426 = vmul.f32 1.0, %v2425
        %v2427 = vrcp.pop %v2398
        %v2428 = vmul.f32 1.0, %v2427
        %v2429 = vrcp.pop %v2399
        %v2430 = vmul.f32 1.0, %v2429
        %v2431 = vrcp.pop %v2400
        %v2432 = vmul.f32 1.0, %v2431
        %v2433 = vadd.f32 %v2279, %v1543
        %v2434 = vadd.f32 %v2281, %v1547
        %v2435 = vadd.f32 %v2283, %v1543
        %v2436 = vadd.f32 %v2285, %v1547
        %v2437 = vadd.f32 %v2289, %v1543
        %v2438 = vadd.f32 %v2291, %v1547
        %v2439 = vadd.f32 %v2293, %v1543
        %v2440 = vadd.f32 %v2295, %v1547
        %v2441 = vmul.f32 %v2402, %v2433
        %v2442 = vmul.f32 %v2404, %v2434
        %v2443 = vmul.f32 %v2410, %v2435
        %v2444 = vmul.f32 %v2412, %v2436
        %v2445 = vmul.f32 %v2418, %v2437
        %v2446 = vmul.f32 %v2420, %v2438
        %v2447 = vmul.f32 %v2426, %v2439
        %v2448 = vmul.f32 %v2428, %v2440
        %v2449 = vadd.f32 %v2301, %v2441
        %v2450 = vadd.f32 %v2302, %v2442
        %v2451 = vadd.f32 %v2307, %v2443
        %v2452 = vadd.f32 %v2308, %v2444
        %v2453 = vadd.f32 %v2313, %v2445
        %v2454 = vadd.f32 %v2314, %v2446
        %v2455 = vadd.f32 %v2319, %v2447
        %v2456 = vadd.f32 %v2320, %v2448
        %v2457 = vtanh.pop %v2449
        %v2458 = vtanh.pop %v2450
        %v2459 = vtanh.pop %v2451
        %v2460 = vtanh.pop %v2452
        %v2461 = vtanh.pop %v2453
        %v2462 = vtanh.pop %v2454
        %v2463 = vtanh.pop %v2455
        %v2464 = vtanh.pop %v2456
        %v2465 = vsub.f32 1.0, %v2406
        %v2466 = vsub.f32 1.0, %v2408
        %v2467 = vsub.f32 1.0, %v2414
        %v2468 = vsub.f32 1.0, %v2416
        %v2469 = vsub.f32 1.0, %v2422
        %v2470 = vsub.f32 1.0, %v2424
        %v2471 = vsub.f32 1.0, %v2430
        %v2472 = vsub.f32 1.0, %v2432
        %v2473 = vmul.f32 %v2465, %v2457
        %v2474 = vmul.f32 %v2466, %v2458
        %v2475 = vmul.f32 %v2467, %v2459
        %v2476 = vmul.f32 %v2468, %v2460
        %v2477 = vmul.f32 %v2469, %v2461
        %v2478 = vmul.f32 %v2470, %v2462
        %v2479 = vmul.f32 %v2471, %v2463
        %v2480 = vmul.f32 %v2472, %v2464
        %v2481 = vmul.f32 %v2406, %v1550
        %v2482 = vmul.f32 %v2408, %v1551
        %v2483 = vmul.f32 %v2414, %v1552
        %v2484 = vmul.f32 %v2416, %v1553
        %v2485 = vmul.f32 %v2422, %v1554
        %v2486 = vmul.f32 %v2424, %v1555
        %v2487 = vmul.f32 %v2430, %v1556
        %v2488 = vmul.f32 %v2432, %v1557
        %v2489 = vadd.f32 %v2473, %v2481
        %v2490 = vadd.f32 %v2474, %v2482
        %v2491 = vadd.f32 %v2475, %v2483
        %v2492 = vadd.f32 %v2476, %v2484
        %v2493 = vadd.f32 %v2477, %v2485
        %v2494 = vadd.f32 %v2478, %v2486
        %v2495 = vadd.f32 %v2479, %v2487
        %v2496 = vadd.f32 %v2480, %v2488
        %v2497 = vpack.c.bf16 %v2491, %v2489
        %v2498 = vpack.c.bf16 %v2492, %v2490
        %v2499 = vpack.c.bf16 %v2495, %v2493
        %v2500 = vpack.c.bf16 %v2496, %v2494
        %v2505 = vunpack.c.l.b16 %v2497
        %v2506 = vunpack.c.l.b16 %v2498
        %v2507 = vunpack.c.h.b16 %v2497
        %v2508 = vunpack.c.h.b16 %v2498
        %v2509 = vunpack.c.l.b16 %v2499
        %v2510 = vunpack.c.l.b16 %v2500
        %v2511 = vunpack.c.h.b16 %v2499
        %v2512 = vunpack.c.h.b16 %v2500
        %v2513 = vpack.c.b16 %v2506, %v2505
        %v2514 = vpack.c.b16 %v2508, %v2507
        %v2515 = vpack.c.b16 %v2510, %v2509
        %v2516 = vpack.c.b16 %v2512, %v2511
        %2521 = vst [vmem:[#allocation4] sm:$0xff] %v2513
        %2522 = vst [vmem:[#allocation4 + $0x8] sm:$0xff] %v2514
        %2523 = vst [vmem:[#allocation4 + $0x10] sm:$0xff] %v2515
        %2524 = vst [vmem:[#allocation4 + $0x18] sm:$0xff] %v2516
        %2525 = vst [vmem:[#allocation2] sm:$0xff] %v2489
        %2526 = vst [vmem:[#allocation2 + $0x8] sm:$0xff] %v2490
        %2527 = vst [vmem:[#allocation2 + $0x10] sm:$0xff] %v2491
        %2528 = vst [vmem:[#allocation2 + $0x18] sm:$0xff] %v2492
        %2529 = vst [vmem:[#allocation2 + $0x20] sm:$0xff] %v2493
        %2530 = vst [vmem:[#allocation2 + $0x28] sm:$0xff] %v2494
        %2531 = vst [vmem:[#allocation2 + $0x30] sm:$0xff] %v2495
        %2532 = vst [vmem:[#allocation2 + $0x38] sm:$0xff] %v2496
        %v2533 = vld [vmem:[#allocation4] sm:$0xff]
        %v2534 = vld [vmem:[#allocation4 + $0x8] sm:$0xff]
        %v2535 = vld [vmem:[#allocation4 + $0x10] sm:$0xff]
        %v2536 = vld [vmem:[#allocation4 + $0x18] sm:$0xff]
        %v2537 = vld [vmem:[#allocation14] sm:$0xf]
        %v2538 = vld [vmem:[#allocation14 + $0x4] sm:$0xf]
        %v2539 = vld [vmem:[#allocation14 + $0x8] sm:$0xf]
        %v2540 = vld [vmem:[#allocation14 + $0xc] sm:$0xf]
        %v2541 = vld [vmem:[#allocation14 + $0x10] sm:$0xf]
        %v2542 = vld [vmem:[#allocation14 + $0x14] sm:$0xf]
        %v2543 = vld [vmem:[#allocation14 + $0x18] sm:$0xf]
        %v2544 = vld [vmem:[#allocation14 + $0x1c] sm:$0xf]
        %v2545 = vld [vmem:[#allocation14 + $0x20] sm:$0xf]
        %v2546 = vld [vmem:[#allocation14 + $0x24] sm:$0xf]
        %v2547 = vld [vmem:[#allocation14 + $0x28] sm:$0xf]
        %v2548 = vld [vmem:[#allocation14 + $0x2c] sm:$0xf]
        %v2549 = vld [vmem:[#allocation14 + $0x30] sm:$0xf]
        %v2550 = vld [vmem:[#allocation14 + $0x34] sm:$0xf]
        %v2551 = vld [vmem:[#allocation14 + $0x38] sm:$0xf]
        %v2552 = vld [vmem:[#allocation14 + $0x3c] sm:$0xf]
        %v2553 = vld [vmem:[#allocation14 + $0x40] sm:$0xf]
        %v2554 = vld [vmem:[#allocation14 + $0x44] sm:$0xf]
        %v2555 = vld [vmem:[#allocation14 + $0x48] sm:$0xf]
        %v2556 = vld [vmem:[#allocation14 + $0x4c] sm:$0xf]
        %v2557 = vld [vmem:[#allocation14 + $0x50] sm:$0xf]
        %v2558 = vld [vmem:[#allocation14 + $0x54] sm:$0xf]
        %v2559 = vld [vmem:[#allocation14 + $0x58] sm:$0xf]
        %v2560 = vld [vmem:[#allocation14 + $0x5c] sm:$0xf]
        %v2561 = vld [vmem:[#allocation14 + $0x60] sm:$0xf]
        %v2562 = vld [vmem:[#allocation14 + $0x64] sm:$0xf]
        %v2563 = vld [vmem:[#allocation14 + $0x68] sm:$0xf]
        %v2564 = vld [vmem:[#allocation14 + $0x6c] sm:$0xf]
        %v2565 = vld [vmem:[#allocation14 + $0x70] sm:$0xf]
        %v2566 = vld [vmem:[#allocation14 + $0x74] sm:$0xf]
        %v2567 = vld [vmem:[#allocation14 + $0x78] sm:$0xf]
        %v2568 = vld [vmem:[#allocation14 + $0x7c] sm:$0xf]
        %v2569 = vld [vmem:[%s9] sm:$0x1]
        %v2571 = vlaneseq
        %v2572 = vshrl.u32 %v2571, 7
        %v2573 = vsub.s32 0, %v2572
        %v2574 = vrot.slane %v2569, %v2573
        %v2580 = vunpack.c.l.b16 %v2533
        %v2581 = vunpack.c.h.b16 %v2533
        %v2582 = vunpack.c.l.b16 %v2534
        %v2583 = vunpack.c.h.b16 %v2534
        %v2584 = vunpack.c.l.b16 %v2535
        %v2585 = vunpack.c.h.b16 %v2535
        %v2586 = vunpack.c.l.b16 %v2536
        %v2587 = vunpack.c.h.b16 %v2536
        %v2588 = vpack.c.b16 %v2582, %v2580
        %v2589 = vpack.c.b16 %v2583, %v2581
        %v2590 = vpack.c.b16 %v2586, %v2584
        %v2591 = vpack.c.b16 %v2587, %v2585
        %v2628 = vunpack.c.l.b16 %v2537
        %v2629 = vunpack.c.l.b16 %v2538
        %v2630 = vunpack.c.l.b16 %v2539
        %v2631 = vunpack.c.l.b16 %v2540
        %v2632 = vunpack.c.l.b16 %v2541
        %v2633 = vunpack.c.l.b16 %v2542
        %v2634 = vunpack.c.l.b16 %v2543
        %v2635 = vunpack.c.l.b16 %v2544
        %v2636 = vunpack.c.l.b16 %v2545
        %v2637 = vunpack.c.l.b16 %v2546
        %v2638 = vunpack.c.l.b16 %v2547
        %v2639 = vunpack.c.l.b16 %v2548
        %v2640 = vunpack.c.l.b16 %v2549
        %v2641 = vunpack.c.l.b16 %v2550
        %v2642 = vunpack.c.l.b16 %v2551
        %v2643 = vunpack.c.l.b16 %v2552
        %v2644 = vunpack.c.l.b16 %v2553
        %v2645 = vunpack.c.l.b16 %v2554
        %v2646 = vunpack.c.l.b16 %v2555
        %v2647 = vunpack.c.l.b16 %v2556
        %v2648 = vunpack.c.l.b16 %v2557
        %v2649 = vunpack.c.l.b16 %v2558
        %v2650 = vunpack.c.l.b16 %v2559
        %v2651 = vunpack.c.l.b16 %v2560
        %v2652 = vunpack.c.l.b16 %v2561
        %v2653 = vunpack.c.l.b16 %v2562
        %v2654 = vunpack.c.l.b16 %v2563
        %v2655 = vunpack.c.l.b16 %v2564
        %v2656 = vunpack.c.l.b16 %v2565
        %v2657 = vunpack.c.l.b16 %v2566
        %v2658 = vunpack.c.l.b16 %v2567
        %v2659 = vunpack.c.l.b16 %v2568
        %v2660 = vpack.c.b16 %v2629, %v2628
        %v2661 = vpack.c.b16 %v2631, %v2630
        %v2662 = vpack.c.b16 %v2633, %v2632
        %v2663 = vpack.c.b16 %v2635, %v2634
        %v2664 = vpack.c.b16 %v2637, %v2636
        %v2665 = vpack.c.b16 %v2639, %v2638
        %v2666 = vpack.c.b16 %v2641, %v2640
        %v2667 = vpack.c.b16 %v2643, %v2642
        %v2668 = vpack.c.b16 %v2645, %v2644
        %v2669 = vpack.c.b16 %v2647, %v2646
        %v2670 = vpack.c.b16 %v2649, %v2648
        %v2671 = vpack.c.b16 %v2651, %v2650
        %v2672 = vpack.c.b16 %v2653, %v2652
        %v2673 = vpack.c.b16 %v2655, %v2654
        %v2674 = vpack.c.b16 %v2657, %v2656
        %v2675 = vpack.c.b16 %v2659, %v2658
        %2692 = vmatprep.subr.bf16.mxu0 0
        %2693 = vmatpush1.bf16.msra.mxu0 %v2667
        %2694 = vmatprep.subr.bf16.mxu0 0
        %2695 = vmatpush1.bf16.msra.mxu0 %v2666
        %2696 = vmatprep.subr.bf16.mxu0 0
        %2697 = vmatpush1.bf16.msra.mxu0 %v2665
        %2698 = vmatprep.subr.bf16.mxu0 0
        %2699 = vmatpush1.bf16.msra.mxu0 %v2664
        %2700 = vmatprep.subr.bf16.mxu0 0
        %2701 = vmatpush1.bf16.msra.mxu0 %v2663
        %2702 = vmatprep.subr.bf16.mxu0 0
        %2703 = vmatpush1.bf16.msra.mxu0 %v2662
        %2704 = vmatprep.subr.bf16.mxu0 0
        %2705 = vmatpush1.bf16.msra.mxu0 %v2661
        %2706 = vmatprep.subr.bf16.mxu0 0
        %2707 = vmatpush1.bf16.msra.mxu0 %v2660
        %2708 = vmatprep.subr.bf16.mxu0 0
        %2709 = vmatpush2.bf16.msra.mxu0 %v2675
        %2710 = vmatprep.subr.bf16.mxu0 0
        %2711 = vmatpush2.bf16.msra.mxu0 %v2674
        %2712 = vmatprep.subr.bf16.mxu0 0
        %2713 = vmatpush2.bf16.msra.mxu0 %v2673
        %2714 = vmatprep.subr.bf16.mxu0 0
        %2715 = vmatpush2.bf16.msra.mxu0 %v2672
        %2716 = vmatprep.subr.bf16.mxu0 0
        %2717 = vmatpush2.bf16.msra.mxu0 %v2671
        %2718 = vmatprep.subr.bf16.mxu0 0
        %2719 = vmatpush2.bf16.msra.mxu0 %v2670
        %2720 = vmatprep.subr.bf16.mxu0 0
        %2721 = vmatpush2.bf16.msra.mxu0 %v2669
        %2722 = vmatprep.subr.bf16.mxu0 0
        %2723 = vmatpush2.bf16.msra.mxu0 %v2668
        %2724 = vmatprep.mubr.bf16.mxu0 %v2589
        %2725 = vmatmul.mubr.bf16.gmra.mxu0 %v2588
        %v2726 = vpop.f32.mrf.mxu0
        %v2727 = vadd.f32 %v2574, %v2726
        %v2728 = vpop.f32.mrf.mxu0
        %v2729 = vpop.f32.mrf.mxu0
        %v2730 = vadd.f32 %v2574, %v2729
        %v2731 = vpop.f32.mrf.mxu0
        %2732 = vmatprep.mubr.bf16.mxu0 %v2591
        %2733 = vmatmul.mubr.bf16.gmra.mxu0 %v2590
        %v2734 = vpop.f32.mrf.mxu0
        %v2735 = vadd.f32 %v2574, %v2734
        %v2736 = vpop.f32.mrf.mxu0
        %v2737 = vpop.f32.mrf.mxu0
        %v2738 = vadd.f32 %v2574, %v2737
        %v2739 = vpop.f32.mrf.mxu0
        %2740 = vdwg.mxu0
        %2741 = vst [vmem:[%s525] sm:$0xff] %v2727
        %2742 = vst [vmem:[%s525 + $0x8] sm:$0xff] %v2730
        %2743 = vst [vmem:[%s525 + $0x10] sm:$0xff] %v2735
        %2744 = vst [vmem:[%s525 + $0x18] sm:$0xff] %v2738
        // Predicated region
        $region89: #{tpu_custom_call.1} parent=59 // pred_check
          %p2745 = pneg %p538
        $region90: #{tpu_custom_call.1} parent=59 // pred_check_branch
          %2747 = sbr.rel (%p2745) target = $region92
        $region91: #{tpu_custom_call.1} parent=59 // pred_region
          %2748 = vst [vmem:[%s532] sm:$0xff] %v2489
          %2749 = vst [vmem:[%s532 + $0x8] sm:$0xff] %v2490
          %2750 = vst [vmem:[%s532 + $0x10] sm:$0xff] %v2491
          %2751 = vst [vmem:[%s532 + $0x18] sm:$0xff] %v2492
          %2752 = vst [vmem:[%s532 + $0x20] sm:$0xff] %v2493
          %2753 = vst [vmem:[%s532 + $0x28] sm:$0xff] %v2494
          %2754 = vst [vmem:[%s532 + $0x30] sm:$0xff] %v2495
          %2755 = vst [vmem:[%s532 + $0x38] sm:$0xff] %v2496
        $region92: #{tpu_custom_call.1} parent=59 // pred_fallthru
          _
        %s2756 = sand.u32 %s281, 1
        %s2757 = scalar_lea.sflag [#allocation7], %s2756
        %s2758 = sand.u32 %s281, 1
        %s2759 = smul.addr %s2758, 32
        %s2760 = scalar_lea.vmem [#allocation16], %s2759
        %s2761 = sand.u32 %s307, 1
        %s2762 = scalar_lea.sflag [#allocation18], %s2761
        %s2763 = sand.u32 %s307, 1
        %s2764 = smul.addr %s2763, 64
        %s2765 = scalar_lea.vmem [#allocation17], %s2764
        // Predicated region
        $region93: #{tpu_custom_call.1} parent=59 // pred_check
          %p2766 = pneg %p291
        $region94: #{tpu_custom_call.1} parent=59 // pred_check_branch
          %2768 = sbr.rel (%p2766) target = $region96
        $region95: #{tpu_custom_call.1} parent=59 // pred_region
          %s2769 = smul.u32 4, %s41
          %s2771 = ssub.s32 512, 512
          %2772 = vsyncadd %s2757, %s2771
          %s2773 = smul.addr %s42, 8
          %s2774 = sadd.s32 %s2769, %s2773
          %s2775 = smul.addr %s2774, 128
          %s2776 = scalar_lea.hbm %s10, %s2775
          %s2777 = sshll.u32 %s2760, 4
          %s2778 = int_to_ptr.vmem [resolvable:$true] %s2777
          %2783 = dma.vmem_to_hbm [thread:$0]  %s2778, 512, %s2776, %s2757, 128, 128, 8
        $region96: #{tpu_custom_call.1} parent=59 // pred_fallthru
          _
        // Predicated region
        $region97: #{tpu_custom_call.1} parent=59 // pred_check
          %p2784 = pneg %p317
        $region98: #{tpu_custom_call.1} parent=59 // pred_check_branch
          %2786 = sbr.rel (%p2784) target = $region100
        $region99: #{tpu_custom_call.1} parent=59 // pred_region
          %s2787 = smul.u32 4, %s41
          %s2789 = ssub.s32 1024, 1024
          %2790 = vsyncadd %s2762, %s2789
          %s2791 = smul.addr %s2787, 2
          %s2792 = smul.addr %s2791, 128
          %s2793 = scalar_lea.hbm %s11, %s2792
          %s2794 = sshll.u32 %s2765, 4
          %s2795 = int_to_ptr.vmem [resolvable:$true] %s2794
          %2800 = dma.vmem_to_hbm [thread:$0]  %s2795, 1024, %s2793, %s2762, 256, 256, 16
        $region100: #{tpu_custom_call.1} parent=59 // pred_fallthru
          _
      $region60: #{tpu_custom_call.1} parent=5 // pred_fallthru
        _
      %p2801 = scmp.le.s32.totalorder 2, %s32
      // Predicated region
      $region101: #{tpu_custom_call.1} parent=5 // pred_check
        %p2802 = pneg %p2801
      $region102: #{tpu_custom_call.1} parent=5 // pred_check_branch
        %2804 = sbr.rel (%p2802) target = $region104
      $region103: #{tpu_custom_call.1} parent=5 // pred_region
        %s2805 = ssub.s32 %s32, 2
        // Predicated region
        $region105: #{tpu_custom_call.1} parent=103 // pred_check
          %p2806 = pneg %p297
        $region106: #{tpu_custom_call.1} parent=103 // pred_check_branch
          %2808 = sbr.rel (%p2806) target = $region108
        $region107: #{tpu_custom_call.1} parent=103 // pred_region
          %s2809 = sand.u32 %s282, 1
          %s2810 = scalar_lea.sflag [#allocation7], %s2809
          %s2811 = sand.u32 %s282, 1
          %s2812 = smul.addr %s2811, 32
          %s2813 = scalar_lea.vmem [#allocation16], %s2812
          %2814 = dma.done %s2810, 512
        $region108: #{tpu_custom_call.1} parent=103 // pred_fallthru
          _
        // Predicated region
        $region109: #{tpu_custom_call.1} parent=103 // pred_check
          %p2815 = pneg %p323
        $region110: #{tpu_custom_call.1} parent=103 // pred_check_branch
          %2817 = sbr.rel (%p2815) target = $region112
        $region111: #{tpu_custom_call.1} parent=103 // pred_region
          %s2818 = sand.u32 %s308, 1
          %s2819 = scalar_lea.sflag [#allocation18], %s2818
          %s2820 = sand.u32 %s308, 1
          %s2821 = smul.addr %s2820, 64
          %s2822 = scalar_lea.vmem [#allocation17], %s2821
          %2823 = dma.done %s2819, 1024
        $region112: #{tpu_custom_call.1} parent=103 // pred_fallthru
          _
      $region104: #{tpu_custom_call.1} parent=5 // pred_fallthru
        _
    $region6: #{tpu_custom_call.1} parent=1 // loop_footer
      %s36 = sadd.s32 1, %s32
    $region7: #{tpu_custom_call.1} parent=1 // loop_footer_branch
      %31 = sbr.rel target = $region3
    $region8: #{tpu_custom_call.1} parent=1 // loop_exit
      _
    %2824 = vsyncpa [#allocation6], 1
    %s2825 = scalar_lea.sflag [#allocation6], 1
    %2826 = vsyncpa %s2825, 1
    %2827 = vsyncpa [#allocation9], 1
    %s2828 = scalar_lea.sflag [#allocation9], 1
    %2829 = vsyncpa %s2828, 1
    %2830 = vsyncpa [#allocation12], 1
    %2831 = vsyncpa [#allocation15], 1
    %2832 = vsyncpa [#allocation7], 1
    %s2833 = scalar_lea.sflag [#allocation7], 1
    %2834 = vsyncpa %s2833, 1
    %2835 = vsyncpa [#allocation18], 1
    %s2836 = scalar_lea.sflag [#allocation18], 1
    %2837 = vsyncpa %s2836, 1

</llo_original>
